<compile_context>
chip_gen: v5e
topology: v5e:2x2
jax: 0.10.0
libtpu: 0.0.40
codegen_flags: <defaults>
</compile_context>

<pallas_src>
import functools

import jax
import jax.numpy as jnp
from jax.experimental import pallas as pl
from jax.experimental.pallas import tpu as pltpu

IN_S = 3      # state features
IN_A = 2      # action features
HIDDEN = 512
OUT_DIM = 1


def qnet_kernel(s_ref, a_ref,
                w1_ref, b1_ref,
                w2h_ref, w2a_ref, b2_ref,
                w3_ref, b3_ref,
                w4_ref, b4_ref,
                q_ref):
    # Entire forward fused: matmuls on the MXU (bf16 inputs, f32 accumulation),
    # ReLU on the VPU. Weights (~1 MiB bf16) + one batch tile of activations
    # fit comfortably in VMEM.
    s = s_ref[...].astype(jnp.bfloat16)
    a = a_ref[...].astype(jnp.bfloat16)

    h1 = jnp.dot(s, w1_ref[...], preferred_element_type=jnp.float32) + b1_ref[...]
    h1 = jnp.maximum(h1, 0.0)

    # concat([h1, a], axis=1) @ W2  ==  h1 @ W2[:512] + a @ W2[512:]
    h2 = (jnp.dot(h1.astype(jnp.bfloat16), w2h_ref[...],
                  preferred_element_type=jnp.float32)
          + jnp.dot(a, w2a_ref[...], preferred_element_type=jnp.float32)
          + b2_ref[...])
    h2 = jnp.maximum(h2, 0.0)

    h3 = jnp.dot(h2.astype(jnp.bfloat16), w3_ref[...],
                 preferred_element_type=jnp.float32) + b3_ref[...]
    h3 = jnp.maximum(h3, 0.0)

    q_ref[...] = (jnp.dot(h3.astype(jnp.bfloat16), w4_ref[...],
                          preferred_element_type=jnp.float32) + b4_ref[...])


@functools.partial(jax.jit, static_argnames=("tb",))
def qnet_forward(s, a, params, *, tb=256):
    """s: (B, 3) f32, a: (B, 2) f32 -> q: (B, 1) f32."""
    (w1, b1), (w2h, w2a, b2), (w3, b3), (w4, b4) = params
    B = s.shape[0]

    # Batch tile: multiple of 8 (f32 sublane), capped at `tb`.
    if B >= tb:
        TB = tb
    else:
        TB = max(8, ((B + 7) // 8) * 8)
    B_pad = ((B + TB - 1) // TB) * TB
    if B_pad != B:
        s = jnp.pad(s, ((0, B_pad - B), (0, 0)))
        a = jnp.pad(a, ((0, B_pad - B), (0, 0)))

    batch_spec = lambda shape: pl.BlockSpec(shape, lambda i: (i, 0))   # per-tile
    resident = lambda arr: pl.BlockSpec(arr.shape, lambda i: (0, 0))   # VMEM-resident

    q = pl.pallas_call(
        qnet_kernel,
        out_shape=jax.ShapeDtypeStruct((B_pad, OUT_DIM), jnp.float32),
        grid=(B_pad // TB,),
        in_specs=[
            batch_spec((TB, IN_S)),
            batch_spec((TB, IN_A)),
            resident(w1), resident(b1),
            resident(w2h), resident(w2a), resident(b2),
            resident(w3), resident(b3),
            resident(w4), resident(b4),
        ],
        out_specs=batch_spec((TB, OUT_DIM)),
        compiler_params=pltpu.CompilerParams(
            dimension_semantics=("parallel",),   # shards batch tiles over v7x's 2 TCs
            vmem_limit_bytes=32 * 1024 * 1024,   # explicit; safe on v5e/v6e/v7x
        ),
    )(s, a, w1, b1, w2h, w2a, b2, w3, b3, w4, b4)

    return q[:B]


def init_params(key):
    """Deterministic init mimicking nn.Linear default (uniform +-1/sqrt(fan_in)).
    Weights stored as (in, out) in bfloat16; biases as (1, out) in float32.
    fc2's (514, 512) weight is split into W2_h (512,512) and W2_a (2,512)."""
    def linear(key, fan_in, fan_out):
        kw, kb = jax.random.split(key)
        bound = 1.0 / jnp.sqrt(fan_in)
        w = jax.random.uniform(kw, (fan_in, fan_out), jnp.float32, -bound, bound)
        b = jax.random.uniform(kb, (1, fan_out), jnp.float32, -bound, bound)
        return w.astype(jnp.bfloat16), b

    k1, k2, k3, k4 = jax.random.split(key, 4)
    w1, b1 = linear(k1, IN_S, HIDDEN)
    w2, b2 = linear(k2, HIDDEN + IN_A, HIDDEN)
    w2h, w2a = w2[:HIDDEN], w2[HIDDEN:]
    w3, b3 = linear(k3, HIDDEN, HIDDEN)
    w4, b4 = linear(k4, HIDDEN, OUT_DIM)
    return (w1, b1), (w2h, w2a, b2), (w3, b3), (w4, b4)


def reference_bf16(s, a, params):
    """Same bf16-weight / f32-accumulate path as the kernel (tight check)."""
    (w1, b1), (w2h, w2a, b2), (w3, b3), (w4, b4) = params
    dot = lambda x, w: jnp.dot(x.astype(jnp.bfloat16), w,
                               preferred_element_type=jnp.float32)
    h1 = jnp.maximum(dot(s, w1) + b1, 0.0)
    h2 = jnp.maximum(dot(h1, w2h) + dot(a, w2a) + b2, 0.0)
    h3 = jnp.maximum(dot(h2, w3) + b3, 0.0)
    return dot(h3, w4) + b4


def reference_f32(s, a, params):
    """Full-f32 QNet semantics (concat form), matching the PyTorch module."""
    (w1, b1), (w2h, w2a, b2), (w3, b3), (w4, b4) = params
    w2 = jnp.concatenate([w2h, w2a], axis=0).astype(jnp.float32)
    h1 = jnp.maximum(s @ w1.astype(jnp.float32) + b1, 0.0)
    h1a = jnp.concatenate([h1, a], axis=1)
    h2 = jnp.maximum(h1a @ w2 + b2, 0.0)
    h3 = jnp.maximum(h2 @ w3.astype(jnp.float32) + b3, 0.0)
    return h3 @ w4.astype(jnp.float32) + b4


if __name__ == "__main__":
    key = jax.random.PRNGKey(0)
    k_params, k_s, k_a = jax.random.split(key, 3)

    params = init_params(k_params)
    batch = 8
    s = jax.random.normal(k_s, (batch, IN_S), jnp.float32)
    a = jax.random.normal(k_a, (batch, IN_A), jnp.float32)

    q = jax.block_until_ready(qnet_forward(s, a, params))
    assert q.shape == (batch, OUT_DIM)

    # Tight check against the identical bf16 compute path.
    ref_bf16 = reference_bf16(s, a, params)
    assert jnp.allclose(q, ref_bf16, atol=1e-3, rtol=1e-3), "mismatch vs bf16 reference"

    # Looser semantic check against full-f32 QNet (bf16 weight quantization noise).
    ref_f32 = reference_f32(s, a, params)
    assert jnp.allclose(q, ref_f32, atol=5e-2, rtol=5e-2), "mismatch vs f32 reference"

    print("KERNEL_OK")
</pallas_src>

<mosaic_0001>
module attributes {stable_mosaic.version = 11 : i64} {
  func.func @qnet_kernel(%arg0: i32, %arg1: memref<8x3xf32, #tpu.memory_space<vmem>>, %arg2: memref<8x2xf32, #tpu.memory_space<vmem>>, %arg3: memref<3x512xbf16, #tpu.memory_space<vmem>>, %arg4: memref<1x512xf32, #tpu.memory_space<vmem>>, %arg5: memref<512x512xbf16, #tpu.memory_space<vmem>>, %arg6: memref<2x512xbf16, #tpu.memory_space<vmem>>, %arg7: memref<1x512xf32, #tpu.memory_space<vmem>>, %arg8: memref<512x512xbf16, #tpu.memory_space<vmem>>, %arg9: memref<1x512xf32, #tpu.memory_space<vmem>>, %arg10: memref<512x1xbf16, #tpu.memory_space<vmem>>, %arg11: memref<1x1xf32, #tpu.memory_space<vmem>>, %arg12: memref<8x1xf32, #tpu.memory_space<vmem>>) attributes {dimension_semantics = [#tpu.dimension_semantics<parallel>], iteration_bounds = array<i64: 1>, scalar_prefetch = 0 : i64, scratch_operands = 0 : i64, tpu.core_type = #tpu.core_type<tc>, window_params = [{transform_indices = @transform_0, window_bounds = array<i64: 8, 3>}, {transform_indices = @transform_1, window_bounds = array<i64: 8, 2>}, {pipeline_mode = #tpu.pipeline_mode<synchronous>, transform_indices = @transform_2, window_bounds = array<i64: 3, 512>}, {pipeline_mode = #tpu.pipeline_mode<synchronous>, transform_indices = @transform_3, window_bounds = array<i64: 1, 512>}, {pipeline_mode = #tpu.pipeline_mode<synchronous>, transform_indices = @transform_4, window_bounds = array<i64: 512, 512>}, {pipeline_mode = #tpu.pipeline_mode<synchronous>, transform_indices = @transform_5, window_bounds = array<i64: 2, 512>}, {pipeline_mode = #tpu.pipeline_mode<synchronous>, transform_indices = @transform_6, window_bounds = array<i64: 1, 512>}, {pipeline_mode = #tpu.pipeline_mode<synchronous>, transform_indices = @transform_7, window_bounds = array<i64: 512, 512>}, {pipeline_mode = #tpu.pipeline_mode<synchronous>, transform_indices = @transform_8, window_bounds = array<i64: 1, 512>}, {pipeline_mode = #tpu.pipeline_mode<synchronous>, transform_indices = @transform_9, window_bounds = array<i64: 512, 1>}, {pipeline_mode = #tpu.pipeline_mode<synchronous>, transform_indices = @transform_10, window_bounds = array<i64: 1, 1>}, {transform_indices = @transform_11, window_bounds = array<i64: 8, 1>}]} {
    %c0 = arith.constant 0 : index
    %c0_0 = arith.constant 0 : index
    %0 = vector.load %arg1[%c0, %c0_0] : memref<8x3xf32, #tpu.memory_space<vmem>>, vector<8x3xf32>
    %1 = arith.truncf %0 : vector<8x3xf32> to vector<8x3xbf16>
    %c0_1 = arith.constant 0 : index
    %c0_2 = arith.constant 0 : index
    %2 = vector.load %arg2[%c0_1, %c0_2] : memref<8x2xf32, #tpu.memory_space<vmem>>, vector<8x2xf32>
    %3 = arith.truncf %2 : vector<8x2xf32> to vector<8x2xbf16>
    %c0_3 = arith.constant 0 : index
    %c0_4 = arith.constant 0 : index
    %4 = vector.load %arg3[%c0_3, %c0_4] : memref<3x512xbf16, #tpu.memory_space<vmem>>, vector<3x512xbf16>
    %cst = arith.constant dense<0.000000e+00> : vector<8x512xf32>
    %5 = tpu.matmul %1, %4, %cst {dimension_numbers = #tpu.dot_dimension_numbers<[1], [0], [0], [1], [0, 0, 1, 1], [], []>} : vector<8x3xbf16>, vector<3x512xbf16>, vector<8x512xf32> -> vector<8x512xf32>
    %c0_5 = arith.constant 0 : index
    %c0_6 = arith.constant 0 : index
    %6 = vector.load %arg4[%c0_5, %c0_6] : memref<1x512xf32, #tpu.memory_space<vmem>>, vector<1x512xf32>
    %7 = vector.broadcast %6 : vector<1x512xf32> to vector<8x512xf32>
    %8 = arith.addf %5, %7 : vector<8x512xf32>
    %cst_7 = arith.constant 0.000000e+00 : f32
    %9 = vector.broadcast %cst_7 : f32 to vector<8x512xf32>
    %10 = arith.maximumf %8, %9 : vector<8x512xf32>
    %11 = arith.truncf %10 : vector<8x512xf32> to vector<8x512xbf16>
    %c0_8 = arith.constant 0 : index
    %c0_9 = arith.constant 0 : index
    %12 = vector.load %arg5[%c0_8, %c0_9] : memref<512x512xbf16, #tpu.memory_space<vmem>>, vector<512x512xbf16>
    %cst_10 = arith.constant dense<0.000000e+00> : vector<8x512xf32>
    %13 = tpu.matmul %11, %12, %cst_10 {dimension_numbers = #tpu.dot_dimension_numbers<[1], [0], [0], [1], [0, 0, 1, 1], [], []>} : vector<8x512xbf16>, vector<512x512xbf16>, vector<8x512xf32> -> vector<8x512xf32>
    %c0_11 = arith.constant 0 : index
    %c0_12 = arith.constant 0 : index
    %14 = vector.load %arg6[%c0_11, %c0_12] : memref<2x512xbf16, #tpu.memory_space<vmem>>, vector<2x512xbf16>
    %cst_13 = arith.constant dense<0.000000e+00> : vector<8x512xf32>
    %15 = tpu.matmul %3, %14, %cst_13 {dimension_numbers = #tpu.dot_dimension_numbers<[1], [0], [0], [1], [0, 0, 1, 1], [], []>} : vector<8x2xbf16>, vector<2x512xbf16>, vector<8x512xf32> -> vector<8x512xf32>
    %16 = arith.addf %13, %15 : vector<8x512xf32>
    %c0_14 = arith.constant 0 : index
    %c0_15 = arith.constant 0 : index
    %17 = vector.load %arg7[%c0_14, %c0_15] : memref<1x512xf32, #tpu.memory_space<vmem>>, vector<1x512xf32>
    %18 = vector.broadcast %17 : vector<1x512xf32> to vector<8x512xf32>
    %19 = arith.addf %16, %18 : vector<8x512xf32>
    %cst_16 = arith.constant 0.000000e+00 : f32
    %20 = vector.broadcast %cst_16 : f32 to vector<8x512xf32>
    %21 = arith.maximumf %19, %20 : vector<8x512xf32>
    %22 = arith.truncf %21 : vector<8x512xf32> to vector<8x512xbf16>
    %c0_17 = arith.constant 0 : index
    %c0_18 = arith.constant 0 : index
    %23 = vector.load %arg8[%c0_17, %c0_18] : memref<512x512xbf16, #tpu.memory_space<vmem>>, vector<512x512xbf16>
    %cst_19 = arith.constant dense<0.000000e+00> : vector<8x512xf32>
    %24 = tpu.matmul %22, %23, %cst_19 {dimension_numbers = #tpu.dot_dimension_numbers<[1], [0], [0], [1], [0, 0, 1, 1], [], []>} : vector<8x512xbf16>, vector<512x512xbf16>, vector<8x512xf32> -> vector<8x512xf32>
    %c0_20 = arith.constant 0 : index
    %c0_21 = arith.constant 0 : index
    %25 = vector.load %arg9[%c0_20, %c0_21] : memref<1x512xf32, #tpu.memory_space<vmem>>, vector<1x512xf32>
    %26 = vector.broadcast %25 : vector<1x512xf32> to vector<8x512xf32>
    %27 = arith.addf %24, %26 : vector<8x512xf32>
    %cst_22 = arith.constant 0.000000e+00 : f32
    %28 = vector.broadcast %cst_22 : f32 to vector<8x512xf32>
    %29 = arith.maximumf %27, %28 : vector<8x512xf32>
    %30 = arith.truncf %29 : vector<8x512xf32> to vector<8x512xbf16>
    %c0_23 = arith.constant 0 : index
    %c0_24 = arith.constant 0 : index
    %31 = vector.load %arg10[%c0_23, %c0_24] : memref<512x1xbf16, #tpu.memory_space<vmem>>, vector<512x1xbf16>
    %cst_25 = arith.constant dense<0.000000e+00> : vector<8x1xf32>
    %32 = tpu.matmul %30, %31, %cst_25 {dimension_numbers = #tpu.dot_dimension_numbers<[1], [0], [0], [1], [0, 0, 1, 1], [], []>} : vector<8x512xbf16>, vector<512x1xbf16>, vector<8x1xf32> -> vector<8x1xf32>
    %c0_26 = arith.constant 0 : index
    %c0_27 = arith.constant 0 : index
    %33 = vector.load %arg11[%c0_26, %c0_27] : memref<1x1xf32, #tpu.memory_space<vmem>>, vector<1x1xf32>
    %34 = vector.broadcast %33 : vector<1x1xf32> to vector<8x1xf32>
    %35 = arith.addf %32, %34 : vector<8x1xf32>
    %c0_28 = arith.constant 0 : index
    %c0_29 = arith.constant 0 : index
    %36 = vector.load %arg12[%c0_28, %c0_29] : memref<8x1xf32, #tpu.memory_space<vmem>>, vector<8x1xf32>
    tpu.vector_store %arg12[%c0_28, %c0_29], %35 {strides = array<i32>} : memref<8x1xf32, #tpu.memory_space<vmem>>, vector<8x1xf32>,
    return
  }
  func.func @transform_0(%arg0: i32) -> (i32, i32) {
    %c0_i32 = arith.constant 0 : i32
    %c0_i32_0 = arith.constant 0 : i32
    return %arg0, %c0_i32 : i32, i32
  }
  func.func @transform_1(%arg0: i32) -> (i32, i32) {
    %c0_i32 = arith.constant 0 : i32
    %c0_i32_0 = arith.constant 0 : i32
    return %arg0, %c0_i32 : i32, i32
  }
  func.func @transform_2(%arg0: i32) -> (i32, i32) {
    %c0_i32 = arith.constant 0 : i32
    %c0_i32_0 = arith.constant 0 : i32
    %c0_i32_1 = arith.constant 0 : i32
    return %c0_i32, %c0_i32_0 : i32, i32
  }
  func.func @transform_3(%arg0: i32) -> (i32, i32) {
    %c0_i32 = arith.constant 0 : i32
    %c0_i32_0 = arith.constant 0 : i32
    %c0_i32_1 = arith.constant 0 : i32
    return %c0_i32, %c0_i32_0 : i32, i32
  }
  func.func @transform_4(%arg0: i32) -> (i32, i32) {
    %c0_i32 = arith.constant 0 : i32
    %c0_i32_0 = arith.constant 0 : i32
    %c0_i32_1 = arith.constant 0 : i32
    return %c0_i32, %c0_i32_0 : i32, i32
  }
  func.func @transform_5(%arg0: i32) -> (i32, i32) {
    %c0_i32 = arith.constant 0 : i32
    %c0_i32_0 = arith.constant 0 : i32
    %c0_i32_1 = arith.constant 0 : i32
    return %c0_i32, %c0_i32_0 : i32, i32
  }
  func.func @transform_6(%arg0: i32) -> (i32, i32) {
    %c0_i32 = arith.constant 0 : i32
    %c0_i32_0 = arith.constant 0 : i32
    %c0_i32_1 = arith.constant 0 : i32
    return %c0_i32, %c0_i32_0 : i32, i32
  }
  func.func @transform_7(%arg0: i32) -> (i32, i32) {
    %c0_i32 = arith.constant 0 : i32
    %c0_i32_0 = arith.constant 0 : i32
    %c0_i32_1 = arith.constant 0 : i32
    return %c0_i32, %c0_i32_0 : i32, i32
  }
  func.func @transform_8(%arg0: i32) -> (i32, i32) {
    %c0_i32 = arith.constant 0 : i32
    %c0_i32_0 = arith.constant 0 : i32
    %c0_i32_1 = arith.constant 0 : i32
    return %c0_i32, %c0_i32_0 : i32, i32
  }
  func.func @transform_9(%arg0: i32) -> (i32, i32) {
    %c0_i32 = arith.constant 0 : i32
    %c0_i32_0 = arith.constant 0 : i32
    %c0_i32_1 = arith.constant 0 : i32
    return %c0_i32, %c0_i32_0 : i32, i32
  }
  func.func @transform_10(%arg0: i32) -> (i32, i32) {
    %c0_i32 = arith.constant 0 : i32
    %c0_i32_0 = arith.constant 0 : i32
    %c0_i32_1 = arith.constant 0 : i32
    return %c0_i32, %c0_i32_0 : i32, i32
  }
  func.func @transform_11(%arg0: i32) -> (i32, i32) {
    %c0_i32 = arith.constant 0 : i32
    %c0_i32_0 = arith.constant 0 : i32
    return %arg0, %c0_i32 : i32, i32
  }
}

</mosaic_0001>

<llo_original>
// kernel: qnet_forward.1
$region0: #{qnet_forward.1}
  #allocation0 [shape = 'u32[]', space=smem, size = 0x4, offset = 0x4, fixed_abs, tag = 'smem constant byte address 0x4 - core index']
  #allocation1 [shape = 'u32[72,128]{1,0:T(1,128)}', space=vmem, size = 0x9000, scoped, tag = 'internal scratch']
  #allocation2 [shape = 'f32[1,1]{1,0:T(1,128)S(1)}', space=vmem, size = 0x200, scoped, tag = 'scoped memory for qnet_forward.1']
  %s0 = inlined_call_operand.vmem [shape: f32[8,3], index: 0, kind: input, shape index: {}]
  %s1 = inlined_call_operand.vmem [shape: f32[8,2], index: 1, kind: input, shape index: {}]
  %s2 = inlined_call_operand.vmem [shape: bf16[3,512], index: 2, kind: input, shape index: {}]
  %s3 = inlined_call_operand.vmem [shape: f32[1,512], index: 3, kind: input, shape index: {}]
  %s4 = inlined_call_operand.hbm [shape: bf16[512,512], index: 4, kind: input, shape index: {}]
  %s5 = inlined_call_operand.vmem [shape: bf16[2,512], index: 5, kind: input, shape index: {}]
  %s6 = inlined_call_operand.vmem [shape: f32[1,512], index: 6, kind: input, shape index: {}]
  %s7 = inlined_call_operand.hbm [shape: bf16[512,512], index: 7, kind: input, shape index: {}]
  %s8 = inlined_call_operand.vmem [shape: f32[1,512], index: 8, kind: input, shape index: {}]
  %s9 = inlined_call_operand.vmem [shape: bf16[512,1], index: 9, kind: input, shape index: {}]
  %s10 = inlined_call_operand.<no memory space> [shape: f32[1,1], index: 10, kind: input, shape index: {}]
  %s11 = inlined_call_operand.vmem [shape: f32[8,1], index: 11, kind: output, shape index: {}]
  %s12 = sld [smem:[#allocation0]]
  $region62: #{qnet_forward.1} parent=0
    _
  %s14 = ssub.s32 1, %s12
  %s15 = scalar_select 0, %s14, %s12
  %v16 = vstv %s10
  %17 = vst [vmem:[#allocation2] sm:$0x1] %v16
  $region1: #{qnet_forward.1} parent=0
    #allocation3 [shape = 'u8[524288]{0}', space=vmem, size = 0x80000, scoped, tag = 'input window, operand 4, single buffered']
    #allocation4 [shape = 's32[1]{0}', space=sflag, size = 0x4, scoped, tag = 'scoped memory for qnet_forward.1']
    #allocation5 [shape = 'u8[524288]{0}', space=vmem, size = 0x80000, scoped, tag = 'input window, operand 7, single buffered']
    #allocation6 [shape = 's32[1]{0}', space=sflag, size = 0x4, scoped, tag = 'scoped memory for qnet_forward.1']
    %18 = vsyncpa [#allocation4], 0
    %19 = vsyncpa [#allocation6], 0
    // Predicated region
    $region2: #{qnet_forward.1} parent=1 // pred_check
      _
    $region3: #{qnet_forward.1} parent=1 // pred_check_branch
      %21 = sbr.rel (0) target = $region5
    $region4: #{qnet_forward.1} parent=1 // pred_region
      _
    $region5: #{qnet_forward.1} parent=1 // pred_fallthru
      _
    // Predicated region
    $region6: #{qnet_forward.1} parent=1 // pred_check
      _
    $region7: #{qnet_forward.1} parent=1 // pred_check_branch
      %23 = sbr.rel (0) target = $region9
    $region8: #{qnet_forward.1} parent=1 // pred_region
      _
    $region9: #{qnet_forward.1} parent=1 // pred_fallthru
      _
    // Predicated region
    $region10: #{qnet_forward.1} parent=1 // pred_check
      _
    $region11: #{qnet_forward.1} parent=1 // pred_check_branch
      %25 = sbr.rel (0) target = $region13
    $region12: #{qnet_forward.1} parent=1 // pred_region
      _
    $region13: #{qnet_forward.1} parent=1 // pred_fallthru
      _
    // Predicated region
    $region14: #{qnet_forward.1} parent=1 // pred_check
      _
    $region15: #{qnet_forward.1} parent=1 // pred_check_branch
      %27 = sbr.rel (0) target = $region17
    $region16: #{qnet_forward.1} parent=1 // pred_region
      _
    $region17: #{qnet_forward.1} parent=1 // pred_fallthru
      _
    // Predicated region
    $region18: #{qnet_forward.1} parent=1 // pred_check
      _
    $region19: #{qnet_forward.1} parent=1 // pred_check_branch
      %29 = sbr.rel (0) target = $region21
    $region20: #{qnet_forward.1} parent=1 // pred_region
      %31 = vsyncadd [#allocation4], 0
      %s32 = sshll.u32 %s4, 4
      %s33 = int_to_ptr.hbm [resolvable:$true] %s32
      %s34 = sshll.u32 [#allocation3], 4
      %s35 = int_to_ptr.vmem [resolvable:$true] %s34
      %40 = dma.hbm_to_vmem [thread:$0]  %s33, 16384, %s35, [#allocation4], 256, 256, 16
    $region21: #{qnet_forward.1} parent=1 // pred_fallthru
      _
    // Predicated region
    $region22: #{qnet_forward.1} parent=1 // pred_check
      _
    $region23: #{qnet_forward.1} parent=1 // pred_check_branch
      %42 = sbr.rel (0) target = $region25
    $region24: #{qnet_forward.1} parent=1 // pred_region
      _
    $region25: #{qnet_forward.1} parent=1 // pred_fallthru
      _
    // Predicated region
    $region26: #{qnet_forward.1} parent=1 // pred_check
      _
    $region27: #{qnet_forward.1} parent=1 // pred_check_branch
      %44 = sbr.rel (0) target = $region29
    $region28: #{qnet_forward.1} parent=1 // pred_region
      _
    $region29: #{qnet_forward.1} parent=1 // pred_fallthru
      _
    // Predicated region
    $region30: #{qnet_forward.1} parent=1 // pred_check
      _
    $region31: #{qnet_forward.1} parent=1 // pred_check_branch
      %46 = sbr.rel (0) target = $region33
    $region32: #{qnet_forward.1} parent=1 // pred_region
      %48 = vsyncadd [#allocation6], 0
      %s49 = sshll.u32 %s7, 4
      %s50 = int_to_ptr.hbm [resolvable:$true] %s49
      %s51 = sshll.u32 [#allocation5], 4
      %s52 = int_to_ptr.vmem [resolvable:$true] %s51
      %57 = dma.hbm_to_vmem [thread:$0]  %s50, 16384, %s52, [#allocation6], 256, 256, 16
    $region33: #{qnet_forward.1} parent=1 // pred_fallthru
      _
    // Predicated region
    $region34: #{qnet_forward.1} parent=1 // pred_check
      _
    $region35: #{qnet_forward.1} parent=1 // pred_check_branch
      %59 = sbr.rel (0) target = $region37
    $region36: #{qnet_forward.1} parent=1 // pred_region
      _
    $region37: #{qnet_forward.1} parent=1 // pred_fallthru
      _
    // Predicated region
    $region38: #{qnet_forward.1} parent=1 // pred_check
      _
    $region39: #{qnet_forward.1} parent=1 // pred_check_branch
      %61 = sbr.rel (0) target = $region41
    $region40: #{qnet_forward.1} parent=1 // pred_region
      _
    $region41: #{qnet_forward.1} parent=1 // pred_fallthru
      _
    // Predicated region
    $region42: #{qnet_forward.1} parent=1 // pred_check
      _
    $region43: #{qnet_forward.1} parent=1 // pred_check_branch
      %63 = sbr.rel (0) target = $region45
    $region44: #{qnet_forward.1} parent=1 // pred_region
      _
    $region45: #{qnet_forward.1} parent=1 // pred_fallthru
      _
    // Predicated region
    $region46: #{qnet_forward.1} parent=1 // pred_check
      _
    $region47: #{qnet_forward.1} parent=1 // pred_check_branch
      %65 = sbr.rel (0) target = $region49
    $region48: #{qnet_forward.1} parent=1 // pred_region
      %67 = dma.done [#allocation4], 16384
    $region49: #{qnet_forward.1} parent=1 // pred_fallthru
      _
    // Predicated region
    $region50: #{qnet_forward.1} parent=1 // pred_check
      _
    $region51: #{qnet_forward.1} parent=1 // pred_check_branch
      %69 = sbr.rel (0) target = $region53
    $region52: #{qnet_forward.1} parent=1 // pred_region
      %71 = dma.done [#allocation6], 16384
    $region53: #{qnet_forward.1} parent=1 // pred_fallthru
      _
    %v73 = vld [vmem:[%s0] sm:$0xff]
    %v74 = vpack.c.bf16 %v73, %v73
    %v75 = vld [vmem:[%s1] sm:$0xff]
    %v76 = vpack.c.bf16 %v75, %v75
    %v77 = vld [vmem:[%s2] sm:$0xff]
    %v78 = vld [vmem:[%s3] sm:$0xf]
    %v80 = vperm.slane %v78, 0
    %v81 = vperm.slane %v78, 1
    %v82 = vperm.slane %v78, 2
    %v83 = vperm.slane %v78, 3
    %89 = vst [vmem:[#allocation1] ss:$4 sm:$0xff] %v77
    %v90 = vld.sshfl [vmem:[#allocation1] sm:$0xff pattern:$0x73625140]
    %v91 = vld.sshfl [vmem:[#allocation1 + $0x8] sm:$0xff pattern:$0x73625140]
    %v92 = vld.sshfl [vmem:[#allocation1 + $0x10] sm:$0xff pattern:$0x73625140]
    %v93 = vld.sshfl [vmem:[#allocation1 + $0x18] sm:$0xff pattern:$0x73625140]
    %vm94 = vcmask 23552
    %v96 = vsel %vm94, %v74, 0
    %vm98 = vcmask 1040384
    %vm99 = vcmask 1041408
    %v100 = vsel %vm98, 4294967295, 65535
    %v101 = vsel %vm99, %v100, 0
    %v102 = vand.u32 %v90, %v101
    %v104 = vand.u32 %v91, %v101
    %v106 = vand.u32 %v92, %v101
    %v108 = vand.u32 %v93, %v101
    %110 = vmatpush.bf16.msra.mxu0 0
    %111 = vmatpush.bf16.msra.mxu0 0
    %112 = vmatpush.bf16.msra.mxu0 0
    %113 = vmatpush.bf16.msra.mxu0 0
    %114 = vmatpush.bf16.msra.mxu0 0
    %115 = vmatpush.bf16.msra.mxu0 0
    %116 = vmatpush.bf16.msra.mxu0 0
    %117 = vmatpush.bf16.msra.mxu0 %v102
    %118 = vmatmul.bf16.gmra.mxu0 %v96
    %v119 = vpop.f32.mrf.mxu0
    %v120 = vadd.f32 %v80, %v119
    %v121 = vpop.f32.mrf.mxu0
    %122 = vdwg.mxu0
    %123 = vmatpush.bf16.msra.mxu0 0
    %124 = vmatpush.bf16.msra.mxu0 0
    %125 = vmatpush.bf16.msra.mxu0 0
    %126 = vmatpush.bf16.msra.mxu0 0
    %127 = vmatpush.bf16.msra.mxu0 0
    %128 = vmatpush.bf16.msra.mxu0 0
    %129 = vmatpush.bf16.msra.mxu0 0
    %130 = vmatpush.bf16.msra.mxu0 %v104
    %131 = vmatmul.bf16.gmra.mxu0 %v96
    %v132 = vpop.f32.mrf.mxu0
    %v133 = vadd.f32 %v81, %v132
    %v134 = vpop.f32.mrf.mxu0
    %135 = vdwg.mxu0
    %136 = vmatpush.bf16.msra.mxu0 0
    %137 = vmatpush.bf16.msra.mxu0 0
    %138 = vmatpush.bf16.msra.mxu0 0
    %139 = vmatpush.bf16.msra.mxu0 0
    %140 = vmatpush.bf16.msra.mxu0 0
    %141 = vmatpush.bf16.msra.mxu0 0
    %142 = vmatpush.bf16.msra.mxu0 0
    %143 = vmatpush.bf16.msra.mxu0 %v106
    %144 = vmatmul.bf16.gmra.mxu0 %v96
    %v145 = vpop.f32.mrf.mxu0
    %v146 = vadd.f32 %v82, %v145
    %v147 = vpop.f32.mrf.mxu0
    %148 = vdwg.mxu0
    %149 = vmatpush.bf16.msra.mxu0 0
    %150 = vmatpush.bf16.msra.mxu0 0
    %151 = vmatpush.bf16.msra.mxu0 0
    %152 = vmatpush.bf16.msra.mxu0 0
    %153 = vmatpush.bf16.msra.mxu0 0
    %154 = vmatpush.bf16.msra.mxu0 0
    %155 = vmatpush.bf16.msra.mxu0 0
    %156 = vmatpush.bf16.msra.mxu0 %v108
    %157 = vmatmul.bf16.gmra.mxu0 %v96
    %v158 = vpop.f32.mrf.mxu0
    %v159 = vadd.f32 %v83, %v158
    %v160 = vpop.f32.mrf.mxu0
    %161 = vdwg.mxu0
    %v162 = vmax.f32 %v120, 0.0
    %v163 = vmax.f32 %v133, 0.0
    %v164 = vmax.f32 %v146, 0.0
    %v165 = vmax.f32 %v159, 0.0
    %v166 = vpack.c.bf16 %v162, %v162
    %v167 = vpack.c.bf16 %v163, %v163
    %v168 = vpack.c.bf16 %v164, %v164
    %v169 = vpack.c.bf16 %v165, %v165
    %v170 = vld [vmem:[#allocation3] sm:$0xff]
    %v171 = vld [vmem:[#allocation3 + $0x8] sm:$0xff]
    %v172 = vld [vmem:[#allocation3 + $0x10] sm:$0xff]
    %v173 = vld [vmem:[#allocation3 + $0x18] sm:$0xff]
    %v174 = vld [vmem:[#allocation3 + $0x20] sm:$0xff]
    %v175 = vld [vmem:[#allocation3 + $0x28] sm:$0xff]
    %v176 = vld [vmem:[#allocation3 + $0x30] sm:$0xff]
    %v177 = vld [vmem:[#allocation3 + $0x38] sm:$0xff]
    %v178 = vld [vmem:[#allocation3 + $0x40] sm:$0xff]
    %v179 = vld [vmem:[#allocation3 + $0x48] sm:$0xff]
    %v180 = vld [vmem:[#allocation3 + $0x50] sm:$0xff]
    %v181 = vld [vmem:[#allocation3 + $0x58] sm:$0xff]
    %v182 = vld [vmem:[#allocation3 + $0x60] sm:$0xff]
    %v183 = vld [vmem:[#allocation3 + $0x68] sm:$0xff]
    %v184 = vld [vmem:[#allocation3 + $0x70] sm:$0xff]
    %v185 = vld [vmem:[#allocation3 + $0x78] sm:$0xff]
    %v186 = vld [vmem:[#allocation3 + $0x80] sm:$0xff]
    %v187 = vld [vmem:[#allocation3 + $0x88] sm:$0xff]
    %v188 = vld [vmem:[#allocation3 + $0x90] sm:$0xff]
    %v189 = vld [vmem:[#allocation3 + $0x98] sm:$0xff]
    %v190 = vld [vmem:[#allocation3 + $0xa0] sm:$0xff]
    %v191 = vld [vmem:[#allocation3 + $0xa8] sm:$0xff]
    %v192 = vld [vmem:[#allocation3 + $0xb0] sm:$0xff]
    %v193 = vld [vmem:[#allocation3 + $0xb8] sm:$0xff]
    %v194 = vld [vmem:[#allocation3 + $0xc0] sm:$0xff]
    %v195 = vld [vmem:[#allocation3 + $0xc8] sm:$0xff]
    %v196 = vld [vmem:[#allocation3 + $0xd0] sm:$0xff]
    %v197 = vld [vmem:[#allocation3 + $0xd8] sm:$0xff]
    %v198 = vld [vmem:[#allocation3 + $0xe0] sm:$0xff]
    %v199 = vld [vmem:[#allocation3 + $0xe8] sm:$0xff]
    %v200 = vld [vmem:[#allocation3 + $0xf0] sm:$0xff]
    %v201 = vld [vmem:[#allocation3 + $0xf8] sm:$0xff]
    %v202 = vld [vmem:[#allocation3 + $0x100] sm:$0xff]
    %v203 = vld [vmem:[#allocation3 + $0x108] sm:$0xff]
    %v204 = vld [vmem:[#allocation3 + $0x110] sm:$0xff]
    %v205 = vld [vmem:[#allocation3 + $0x118] sm:$0xff]
    %v206 = vld [vmem:[#allocation3 + $0x120] sm:$0xff]
    %v207 = vld [vmem:[#allocation3 + $0x128] sm:$0xff]
    %v208 = vld [vmem:[#allocation3 + $0x130] sm:$0xff]
    %v209 = vld [vmem:[#allocation3 + $0x138] sm:$0xff]
    %v210 = vld [vmem:[#allocation3 + $0x140] sm:$0xff]
    %v211 = vld [vmem:[#allocation3 + $0x148] sm:$0xff]
    %v212 = vld [vmem:[#allocation3 + $0x150] sm:$0xff]
    %v213 = vld [vmem:[#allocation3 + $0x158] sm:$0xff]
    %v214 = vld [vmem:[#allocation3 + $0x160] sm:$0xff]
    %v215 = vld [vmem:[#allocation3 + $0x168] sm:$0xff]
    %v216 = vld [vmem:[#allocation3 + $0x170] sm:$0xff]
    %v217 = vld [vmem:[#allocation3 + $0x178] sm:$0xff]
    %v218 = vld [vmem:[#allocation3 + $0x180] sm:$0xff]
    %v219 = vld [vmem:[#allocation3 + $0x188] sm:$0xff]
    %v220 = vld [vmem:[#allocation3 + $0x190] sm:$0xff]
    %v221 = vld [vmem:[#allocation3 + $0x198] sm:$0xff]
    %v222 = vld [vmem:[#allocation3 + $0x1a0] sm:$0xff]
    %v223 = vld [vmem:[#allocation3 + $0x1a8] sm:$0xff]
    %v224 = vld [vmem:[#allocation3 + $0x1b0] sm:$0xff]
    %v225 = vld [vmem:[#allocation3 + $0x1b8] sm:$0xff]
    %v226 = vld [vmem:[#allocation3 + $0x1c0] sm:$0xff]
    %v227 = vld [vmem:[#allocation3 + $0x1c8] sm:$0xff]
    %v228 = vld [vmem:[#allocation3 + $0x1d0] sm:$0xff]
    %v229 = vld [vmem:[#allocation3 + $0x1d8] sm:$0xff]
    %v230 = vld [vmem:[#allocation3 + $0x1e0] sm:$0xff]
    %v231 = vld [vmem:[#allocation3 + $0x1e8] sm:$0xff]
    %v232 = vld [vmem:[#allocation3 + $0x1f0] sm:$0xff]
    %v233 = vld [vmem:[#allocation3 + $0x1f8] sm:$0xff]
    %v234 = vld [vmem:[#allocation3 + $0x200] sm:$0xff]
    %v235 = vld [vmem:[#allocation3 + $0x208] sm:$0xff]
    %v236 = vld [vmem:[#allocation3 + $0x210] sm:$0xff]
    %v237 = vld [vmem:[#allocation3 + $0x218] sm:$0xff]
    %v238 = vld [vmem:[#allocation3 + $0x220] sm:$0xff]
    %v239 = vld [vmem:[#allocation3 + $0x228] sm:$0xff]
    %v240 = vld [vmem:[#allocation3 + $0x230] sm:$0xff]
    %v241 = vld [vmem:[#allocation3 + $0x238] sm:$0xff]
    %v242 = vld [vmem:[#allocation3 + $0x240] sm:$0xff]
    %v243 = vld [vmem:[#allocation3 + $0x248] sm:$0xff]
    %v244 = vld [vmem:[#allocation3 + $0x250] sm:$0xff]
    %v245 = vld [vmem:[#allocation3 + $0x258] sm:$0xff]
    %v246 = vld [vmem:[#allocation3 + $0x260] sm:$0xff]
    %v247 = vld [vmem:[#allocation3 + $0x268] sm:$0xff]
    %v248 = vld [vmem:[#allocation3 + $0x270] sm:$0xff]
    %v249 = vld [vmem:[#allocation3 + $0x278] sm:$0xff]
    %v250 = vld [vmem:[#allocation3 + $0x280] sm:$0xff]
    %v251 = vld [vmem:[#allocation3 + $0x288] sm:$0xff]
    %v252 = vld [vmem:[#allocation3 + $0x290] sm:$0xff]
    %v253 = vld [vmem:[#allocation3 + $0x298] sm:$0xff]
    %v254 = vld [vmem:[#allocation3 + $0x2a0] sm:$0xff]
    %v255 = vld [vmem:[#allocation3 + $0x2a8] sm:$0xff]
    %v256 = vld [vmem:[#allocation3 + $0x2b0] sm:$0xff]
    %v257 = vld [vmem:[#allocation3 + $0x2b8] sm:$0xff]
    %v258 = vld [vmem:[#allocation3 + $0x2c0] sm:$0xff]
    %v259 = vld [vmem:[#allocation3 + $0x2c8] sm:$0xff]
    %v260 = vld [vmem:[#allocation3 + $0x2d0] sm:$0xff]
    %v261 = vld [vmem:[#allocation3 + $0x2d8] sm:$0xff]
    %v262 = vld [vmem:[#allocation3 + $0x2e0] sm:$0xff]
    %v263 = vld [vmem:[#allocation3 + $0x2e8] sm:$0xff]
    %v264 = vld [vmem:[#allocation3 + $0x2f0] sm:$0xff]
    %v265 = vld [vmem:[#allocation3 + $0x2f8] sm:$0xff]
    %v266 = vld [vmem:[#allocation3 + $0x300] sm:$0xff]
    %v267 = vld [vmem:[#allocation3 + $0x308] sm:$0xff]
    %v268 = vld [vmem:[#allocation3 + $0x310] sm:$0xff]
    %v269 = vld [vmem:[#allocation3 + $0x318] sm:$0xff]
    %v270 = vld [vmem:[#allocation3 + $0x320] sm:$0xff]
    %v271 = vld [vmem:[#allocation3 + $0x328] sm:$0xff]
    %v272 = vld [vmem:[#allocation3 + $0x330] sm:$0xff]
    %v273 = vld [vmem:[#allocation3 + $0x338] sm:$0xff]
    %v274 = vld [vmem:[#allocation3 + $0x340] sm:$0xff]
    %v275 = vld [vmem:[#allocation3 + $0x348] sm:$0xff]
    %v276 = vld [vmem:[#allocation3 + $0x350] sm:$0xff]
    %v277 = vld [vmem:[#allocation3 + $0x358] sm:$0xff]
    %v278 = vld [vmem:[#allocation3 + $0x360] sm:$0xff]
    %v279 = vld [vmem:[#allocation3 + $0x368] sm:$0xff]
    %v280 = vld [vmem:[#allocation3 + $0x370] sm:$0xff]
    %v281 = vld [vmem:[#allocation3 + $0x378] sm:$0xff]
    %v282 = vld [vmem:[#allocation3 + $0x380] sm:$0xff]
    %v283 = vld [vmem:[#allocation3 + $0x388] sm:$0xff]
    %v284 = vld [vmem:[#allocation3 + $0x390] sm:$0xff]
    %v285 = vld [vmem:[#allocation3 + $0x398] sm:$0xff]
    %v286 = vld [vmem:[#allocation3 + $0x3a0] sm:$0xff]
    %v287 = vld [vmem:[#allocation3 + $0x3a8] sm:$0xff]
    %v288 = vld [vmem:[#allocation3 + $0x3b0] sm:$0xff]
    %v289 = vld [vmem:[#allocation3 + $0x3b8] sm:$0xff]
    %v290 = vld [vmem:[#allocation3 + $0x3c0] sm:$0xff]
    %v291 = vld [vmem:[#allocation3 + $0x3c8] sm:$0xff]
    %v292 = vld [vmem:[#allocation3 + $0x3d0] sm:$0xff]
    %v293 = vld [vmem:[#allocation3 + $0x3d8] sm:$0xff]
    %v294 = vld [vmem:[#allocation3 + $0x3e0] sm:$0xff]
    %v295 = vld [vmem:[#allocation3 + $0x3e8] sm:$0xff]
    %v296 = vld [vmem:[#allocation3 + $0x3f0] sm:$0xff]
    %v297 = vld [vmem:[#allocation3 + $0x3f8] sm:$0xff]
    %v298 = vld [vmem:[%s5] sm:$0xf]
    %300 = vst [vmem:[#allocation1] ss:$9 sm:$0xff] %v298
    %v301 = vld [vmem:[#allocation1] sm:$0xff]
    %v302 = vld [vmem:[#allocation1 + $0x9] sm:$0xff]
    %v303 = vld [vmem:[#allocation1 + $0x12] sm:$0xff]
    %v304 = vld [vmem:[#allocation1 + $0x1b] sm:$0xff]
    %vm305 = vcmask 15360
    %v307 = vsel %vm305, %v76, 0
    %v309 = vsel %vm98, %v301, 0
    %v311 = vsel %vm98, %v302, 0
    %v313 = vsel %vm98, %v303, 0
    %v315 = vsel %vm98, %v304, 0
    %317 = vmatpush.bf16.msra.mxu0 0
    %318 = vmatpush.bf16.msra.mxu0 0
    %319 = vmatpush.bf16.msra.mxu0 0
    %320 = vmatpush.bf16.msra.mxu0 0
    %321 = vmatpush.bf16.msra.mxu0 0
    %322 = vmatpush.bf16.msra.mxu0 0
    %323 = vmatpush.bf16.msra.mxu0 0
    %324 = vmatpush.bf16.msra.mxu0 %v309
    %325 = vmatmul.bf16.gmra.mxu0 %v307
    %v326 = vpop.f32.mrf.mxu0
    %v327 = vadd.f32 0.0, %v326
    %v328 = vpop.f32.mrf.mxu0
    %329 = vdwg.mxu0
    %330 = vmatpush.bf16.msra.mxu0 0
    %331 = vmatpush.bf16.msra.mxu0 0
    %332 = vmatpush.bf16.msra.mxu0 0
    %333 = vmatpush.bf16.msra.mxu0 0
    %334 = vmatpush.bf16.msra.mxu0 0
    %335 = vmatpush.bf16.msra.mxu0 0
    %336 = vmatpush.bf16.msra.mxu0 0
    %337 = vmatpush.bf16.msra.mxu0 %v311
    %338 = vmatmul.bf16.gmra.mxu0 %v307
    %v339 = vpop.f32.mrf.mxu0
    %v340 = vadd.f32 0.0, %v339
    %v341 = vpop.f32.mrf.mxu0
    %342 = vdwg.mxu0
    %343 = vmatpush.bf16.msra.mxu0 0
    %344 = vmatpush.bf16.msra.mxu0 0
    %345 = vmatpush.bf16.msra.mxu0 0
    %346 = vmatpush.bf16.msra.mxu0 0
    %347 = vmatpush.bf16.msra.mxu0 0
    %348 = vmatpush.bf16.msra.mxu0 0
    %349 = vmatpush.bf16.msra.mxu0 0
    %350 = vmatpush.bf16.msra.mxu0 %v313
    %351 = vmatmul.bf16.gmra.mxu0 %v307
    %v352 = vpop.f32.mrf.mxu0
    %v353 = vadd.f32 0.0, %v352
    %v354 = vpop.f32.mrf.mxu0
    %355 = vdwg.mxu0
    %356 = vmatpush.bf16.msra.mxu0 0
    %357 = vmatpush.bf16.msra.mxu0 0
    %358 = vmatpush.bf16.msra.mxu0 0
    %359 = vmatpush.bf16.msra.mxu0 0
    %360 = vmatpush.bf16.msra.mxu0 0
    %361 = vmatpush.bf16.msra.mxu0 0
    %362 = vmatpush.bf16.msra.mxu0 0
    %363 = vmatpush.bf16.msra.mxu0 %v315
    %364 = vmatmul.bf16.gmra.mxu0 %v307
    %v365 = vpop.f32.mrf.mxu0
    %v366 = vadd.f32 0.0, %v365
    %v367 = vpop.f32.mrf.mxu0
    %368 = vdwg.mxu0
    %v497 = vunpack.c.l.b16 %v170
    %v498 = vunpack.c.h.b16 %v170
    %v499 = vunpack.c.l.b16 %v171
    %v500 = vunpack.c.h.b16 %v171
    %v501 = vunpack.c.l.b16 %v172
    %v502 = vunpack.c.h.b16 %v172
    %v503 = vunpack.c.l.b16 %v173
    %v504 = vunpack.c.h.b16 %v173
    %v505 = vunpack.c.l.b16 %v174
    %v506 = vunpack.c.h.b16 %v174
    %v507 = vunpack.c.l.b16 %v175
    %v508 = vunpack.c.h.b16 %v175
    %v509 = vunpack.c.l.b16 %v176
    %v510 = vunpack.c.h.b16 %v176
    %v511 = vunpack.c.l.b16 %v177
    %v512 = vunpack.c.h.b16 %v177
    %v513 = vunpack.c.l.b16 %v178
    %v514 = vunpack.c.h.b16 %v178
    %v515 = vunpack.c.l.b16 %v179
    %v516 = vunpack.c.h.b16 %v179
    %v517 = vunpack.c.l.b16 %v180
    %v518 = vunpack.c.h.b16 %v180
    %v519 = vunpack.c.l.b16 %v181
    %v520 = vunpack.c.h.b16 %v181
    %v521 = vunpack.c.l.b16 %v182
    %v522 = vunpack.c.h.b16 %v182
    %v523 = vunpack.c.l.b16 %v183
    %v524 = vunpack.c.h.b16 %v183
    %v525 = vunpack.c.l.b16 %v184
    %v526 = vunpack.c.h.b16 %v184
    %v527 = vunpack.c.l.b16 %v185
    %v528 = vunpack.c.h.b16 %v185
    %v529 = vunpack.c.l.b16 %v186
    %v530 = vunpack.c.h.b16 %v186
    %v531 = vunpack.c.l.b16 %v187
    %v532 = vunpack.c.h.b16 %v187
    %v533 = vunpack.c.l.b16 %v188
    %v534 = vunpack.c.h.b16 %v188
    %v535 = vunpack.c.l.b16 %v189
    %v536 = vunpack.c.h.b16 %v189
    %v537 = vunpack.c.l.b16 %v190
    %v538 = vunpack.c.h.b16 %v190
    %v539 = vunpack.c.l.b16 %v191
    %v540 = vunpack.c.h.b16 %v191
    %v541 = vunpack.c.l.b16 %v192
    %v542 = vunpack.c.h.b16 %v192
    %v543 = vunpack.c.l.b16 %v193
    %v544 = vunpack.c.h.b16 %v193
    %v545 = vunpack.c.l.b16 %v194
    %v546 = vunpack.c.h.b16 %v194
    %v547 = vunpack.c.l.b16 %v195
    %v548 = vunpack.c.h.b16 %v195
    %v549 = vunpack.c.l.b16 %v196
    %v550 = vunpack.c.h.b16 %v196
    %v551 = vunpack.c.l.b16 %v197
    %v552 = vunpack.c.h.b16 %v197
    %v553 = vunpack.c.l.b16 %v198
    %v554 = vunpack.c.h.b16 %v198
    %v555 = vunpack.c.l.b16 %v199
    %v556 = vunpack.c.h.b16 %v199
    %v557 = vunpack.c.l.b16 %v200
    %v558 = vunpack.c.h.b16 %v200
    %v559 = vunpack.c.l.b16 %v201
    %v560 = vunpack.c.h.b16 %v201
    %v561 = vunpack.c.l.b16 %v202
    %v562 = vunpack.c.h.b16 %v202
    %v563 = vunpack.c.l.b16 %v203
    %v564 = vunpack.c.h.b16 %v203
    %v565 = vunpack.c.l.b16 %v204
    %v566 = vunpack.c.h.b16 %v204
    %v567 = vunpack.c.l.b16 %v205
    %v568 = vunpack.c.h.b16 %v205
    %v569 = vunpack.c.l.b16 %v206
    %v570 = vunpack.c.h.b16 %v206
    %v571 = vunpack.c.l.b16 %v207
    %v572 = vunpack.c.h.b16 %v207
    %v573 = vunpack.c.l.b16 %v208
    %v574 = vunpack.c.h.b16 %v208
    %v575 = vunpack.c.l.b16 %v209
    %v576 = vunpack.c.h.b16 %v209
    %v577 = vunpack.c.l.b16 %v210
    %v578 = vunpack.c.h.b16 %v210
    %v579 = vunpack.c.l.b16 %v211
    %v580 = vunpack.c.h.b16 %v211
    %v581 = vunpack.c.l.b16 %v212
    %v582 = vunpack.c.h.b16 %v212
    %v583 = vunpack.c.l.b16 %v213
    %v584 = vunpack.c.h.b16 %v213
    %v585 = vunpack.c.l.b16 %v214
    %v586 = vunpack.c.h.b16 %v214
    %v587 = vunpack.c.l.b16 %v215
    %v588 = vunpack.c.h.b16 %v215
    %v589 = vunpack.c.l.b16 %v216
    %v590 = vunpack.c.h.b16 %v216
    %v591 = vunpack.c.l.b16 %v217
    %v592 = vunpack.c.h.b16 %v217
    %v593 = vunpack.c.l.b16 %v218
    %v594 = vunpack.c.h.b16 %v218
    %v595 = vunpack.c.l.b16 %v219
    %v596 = vunpack.c.h.b16 %v219
    %v597 = vunpack.c.l.b16 %v220
    %v598 = vunpack.c.h.b16 %v220
    %v599 = vunpack.c.l.b16 %v221
    %v600 = vunpack.c.h.b16 %v221
    %v601 = vunpack.c.l.b16 %v222
    %v602 = vunpack.c.h.b16 %v222
    %v603 = vunpack.c.l.b16 %v223
    %v604 = vunpack.c.h.b16 %v223
    %v605 = vunpack.c.l.b16 %v224
    %v606 = vunpack.c.h.b16 %v224
    %v607 = vunpack.c.l.b16 %v225
    %v608 = vunpack.c.h.b16 %v225
    %v609 = vunpack.c.l.b16 %v226
    %v610 = vunpack.c.h.b16 %v226
    %v611 = vunpack.c.l.b16 %v227
    %v612 = vunpack.c.h.b16 %v227
    %v613 = vunpack.c.l.b16 %v228
    %v614 = vunpack.c.h.b16 %v228
    %v615 = vunpack.c.l.b16 %v229
    %v616 = vunpack.c.h.b16 %v229
    %v617 = vunpack.c.l.b16 %v230
    %v618 = vunpack.c.h.b16 %v230
    %v619 = vunpack.c.l.b16 %v231
    %v620 = vunpack.c.h.b16 %v231
    %v621 = vunpack.c.l.b16 %v232
    %v622 = vunpack.c.h.b16 %v232
    %v623 = vunpack.c.l.b16 %v233
    %v624 = vunpack.c.h.b16 %v233
    %v625 = vunpack.c.l.b16 %v234
    %v626 = vunpack.c.h.b16 %v234
    %v627 = vunpack.c.l.b16 %v235
    %v628 = vunpack.c.h.b16 %v235
    %v629 = vunpack.c.l.b16 %v236
    %v630 = vunpack.c.h.b16 %v236
    %v631 = vunpack.c.l.b16 %v237
    %v632 = vunpack.c.h.b16 %v237
    %v633 = vunpack.c.l.b16 %v238
    %v634 = vunpack.c.h.b16 %v238
    %v635 = vunpack.c.l.b16 %v239
    %v636 = vunpack.c.h.b16 %v239
    %v637 = vunpack.c.l.b16 %v240
    %v638 = vunpack.c.h.b16 %v240
    %v639 = vunpack.c.l.b16 %v241
    %v640 = vunpack.c.h.b16 %v241
    %v641 = vunpack.c.l.b16 %v242
    %v642 = vunpack.c.h.b16 %v242
    %v643 = vunpack.c.l.b16 %v243
    %v644 = vunpack.c.h.b16 %v243
    %v645 = vunpack.c.l.b16 %v244
    %v646 = vunpack.c.h.b16 %v244
    %v647 = vunpack.c.l.b16 %v245
    %v648 = vunpack.c.h.b16 %v245
    %v649 = vunpack.c.l.b16 %v246
    %v650 = vunpack.c.h.b16 %v246
    %v651 = vunpack.c.l.b16 %v247
    %v652 = vunpack.c.h.b16 %v247
    %v653 = vunpack.c.l.b16 %v248
    %v654 = vunpack.c.h.b16 %v248
    %v655 = vunpack.c.l.b16 %v249
    %v656 = vunpack.c.h.b16 %v249
    %v657 = vunpack.c.l.b16 %v250
    %v658 = vunpack.c.h.b16 %v250
    %v659 = vunpack.c.l.b16 %v251
    %v660 = vunpack.c.h.b16 %v251
    %v661 = vunpack.c.l.b16 %v252
    %v662 = vunpack.c.h.b16 %v252
    %v663 = vunpack.c.l.b16 %v253
    %v664 = vunpack.c.h.b16 %v253
    %v665 = vunpack.c.l.b16 %v254
    %v666 = vunpack.c.h.b16 %v254
    %v667 = vunpack.c.l.b16 %v255
    %v668 = vunpack.c.h.b16 %v255
    %v669 = vunpack.c.l.b16 %v256
    %v670 = vunpack.c.h.b16 %v256
    %v671 = vunpack.c.l.b16 %v257
    %v672 = vunpack.c.h.b16 %v257
    %v673 = vunpack.c.l.b16 %v258
    %v674 = vunpack.c.h.b16 %v258
    %v675 = vunpack.c.l.b16 %v259
    %v676 = vunpack.c.h.b16 %v259
    %v677 = vunpack.c.l.b16 %v260
    %v678 = vunpack.c.h.b16 %v260
    %v679 = vunpack.c.l.b16 %v261
    %v680 = vunpack.c.h.b16 %v261
    %v681 = vunpack.c.l.b16 %v262
    %v682 = vunpack.c.h.b16 %v262
    %v683 = vunpack.c.l.b16 %v263
    %v684 = vunpack.c.h.b16 %v263
    %v685 = vunpack.c.l.b16 %v264
    %v686 = vunpack.c.h.b16 %v264
    %v687 = vunpack.c.l.b16 %v265
    %v688 = vunpack.c.h.b16 %v265
    %v689 = vunpack.c.l.b16 %v266
    %v690 = vunpack.c.h.b16 %v266
    %v691 = vunpack.c.l.b16 %v267
    %v692 = vunpack.c.h.b16 %v267
    %v693 = vunpack.c.l.b16 %v268
    %v694 = vunpack.c.h.b16 %v268
    %v695 = vunpack.c.l.b16 %v269
    %v696 = vunpack.c.h.b16 %v269
    %v697 = vunpack.c.l.b16 %v270
    %v698 = vunpack.c.h.b16 %v270
    %v699 = vunpack.c.l.b16 %v271
    %v700 = vunpack.c.h.b16 %v271
    %v701 = vunpack.c.l.b16 %v272
    %v702 = vunpack.c.h.b16 %v272
    %v703 = vunpack.c.l.b16 %v273
    %v704 = vunpack.c.h.b16 %v273
    %v705 = vunpack.c.l.b16 %v274
    %v706 = vunpack.c.h.b16 %v274
    %v707 = vunpack.c.l.b16 %v275
    %v708 = vunpack.c.h.b16 %v275
    %v709 = vunpack.c.l.b16 %v276
    %v710 = vunpack.c.h.b16 %v276
    %v711 = vunpack.c.l.b16 %v277
    %v712 = vunpack.c.h.b16 %v277
    %v713 = vunpack.c.l.b16 %v278
    %v714 = vunpack.c.h.b16 %v278
    %v715 = vunpack.c.l.b16 %v279
    %v716 = vunpack.c.h.b16 %v279
    %v717 = vunpack.c.l.b16 %v280
    %v718 = vunpack.c.h.b16 %v280
    %v719 = vunpack.c.l.b16 %v281
    %v720 = vunpack.c.h.b16 %v281
    %v721 = vunpack.c.l.b16 %v282
    %v722 = vunpack.c.h.b16 %v282
    %v723 = vunpack.c.l.b16 %v283
    %v724 = vunpack.c.h.b16 %v283
    %v725 = vunpack.c.l.b16 %v284
    %v726 = vunpack.c.h.b16 %v284
    %v727 = vunpack.c.l.b16 %v285
    %v728 = vunpack.c.h.b16 %v285
    %v729 = vunpack.c.l.b16 %v286
    %v730 = vunpack.c.h.b16 %v286
    %v731 = vunpack.c.l.b16 %v287
    %v732 = vunpack.c.h.b16 %v287
    %v733 = vunpack.c.l.b16 %v288
    %v734 = vunpack.c.h.b16 %v288
    %v735 = vunpack.c.l.b16 %v289
    %v736 = vunpack.c.h.b16 %v289
    %v737 = vunpack.c.l.b16 %v290
    %v738 = vunpack.c.h.b16 %v290
    %v739 = vunpack.c.l.b16 %v291
    %v740 = vunpack.c.h.b16 %v291
    %v741 = vunpack.c.l.b16 %v292
    %v742 = vunpack.c.h.b16 %v292
    %v743 = vunpack.c.l.b16 %v293
    %v744 = vunpack.c.h.b16 %v293
    %v745 = vunpack.c.l.b16 %v294
    %v746 = vunpack.c.h.b16 %v294
    %v747 = vunpack.c.l.b16 %v295
    %v748 = vunpack.c.h.b16 %v295
    %v749 = vunpack.c.l.b16 %v296
    %v750 = vunpack.c.h.b16 %v296
    %v751 = vunpack.c.l.b16 %v297
    %v752 = vunpack.c.h.b16 %v297
    %v753 = vpack.c.b16 %v501, %v497
    %v754 = vpack.c.b16 %v502, %v498
    %v755 = vpack.c.b16 %v503, %v499
    %v756 = vpack.c.b16 %v504, %v500
    %v757 = vpack.c.b16 %v509, %v505
    %v758 = vpack.c.b16 %v510, %v506
    %v759 = vpack.c.b16 %v511, %v507
    %v760 = vpack.c.b16 %v512, %v508
    %v761 = vpack.c.b16 %v517, %v513
    %v762 = vpack.c.b16 %v518, %v514
    %v763 = vpack.c.b16 %v519, %v515
    %v764 = vpack.c.b16 %v520, %v516
    %v765 = vpack.c.b16 %v525, %v521
    %v766 = vpack.c.b16 %v526, %v522
    %v767 = vpack.c.b16 %v527, %v523
    %v768 = vpack.c.b16 %v528, %v524
    %v769 = vpack.c.b16 %v533, %v529
    %v770 = vpack.c.b16 %v534, %v530
    %v771 = vpack.c.b16 %v535, %v531
    %v772 = vpack.c.b16 %v536, %v532
    %v773 = vpack.c.b16 %v541, %v537
    %v774 = vpack.c.b16 %v542, %v538
    %v775 = vpack.c.b16 %v543, %v539
    %v776 = vpack.c.b16 %v544, %v540
    %v777 = vpack.c.b16 %v549, %v545
    %v778 = vpack.c.b16 %v550, %v546
    %v779 = vpack.c.b16 %v551, %v547
    %v780 = vpack.c.b16 %v552, %v548
    %v781 = vpack.c.b16 %v557, %v553
    %v782 = vpack.c.b16 %v558, %v554
    %v783 = vpack.c.b16 %v559, %v555
    %v784 = vpack.c.b16 %v560, %v556
    %v785 = vpack.c.b16 %v565, %v561
    %v786 = vpack.c.b16 %v566, %v562
    %v787 = vpack.c.b16 %v567, %v563
    %v788 = vpack.c.b16 %v568, %v564
    %v789 = vpack.c.b16 %v573, %v569
    %v790 = vpack.c.b16 %v574, %v570
    %v791 = vpack.c.b16 %v575, %v571
    %v792 = vpack.c.b16 %v576, %v572
    %v793 = vpack.c.b16 %v581, %v577
    %v794 = vpack.c.b16 %v582, %v578
    %v795 = vpack.c.b16 %v583, %v579
    %v796 = vpack.c.b16 %v584, %v580
    %v797 = vpack.c.b16 %v589, %v585
    %v798 = vpack.c.b16 %v590, %v586
    %v799 = vpack.c.b16 %v591, %v587
    %v800 = vpack.c.b16 %v592, %v588
    %v801 = vpack.c.b16 %v597, %v593
    %v802 = vpack.c.b16 %v598, %v594
    %v803 = vpack.c.b16 %v599, %v595
    %v804 = vpack.c.b16 %v600, %v596
    %v805 = vpack.c.b16 %v605, %v601
    %v806 = vpack.c.b16 %v606, %v602
    %v807 = vpack.c.b16 %v607, %v603
    %v808 = vpack.c.b16 %v608, %v604
    %v809 = vpack.c.b16 %v613, %v609
    %v810 = vpack.c.b16 %v614, %v610
    %v811 = vpack.c.b16 %v615, %v611
    %v812 = vpack.c.b16 %v616, %v612
    %v813 = vpack.c.b16 %v621, %v617
    %v814 = vpack.c.b16 %v622, %v618
    %v815 = vpack.c.b16 %v623, %v619
    %v816 = vpack.c.b16 %v624, %v620
    %v817 = vpack.c.b16 %v629, %v625
    %v818 = vpack.c.b16 %v630, %v626
    %v819 = vpack.c.b16 %v631, %v627
    %v820 = vpack.c.b16 %v632, %v628
    %v821 = vpack.c.b16 %v637, %v633
    %v822 = vpack.c.b16 %v638, %v634
    %v823 = vpack.c.b16 %v639, %v635
    %v824 = vpack.c.b16 %v640, %v636
    %v825 = vpack.c.b16 %v645, %v641
    %v826 = vpack.c.b16 %v646, %v642
    %v827 = vpack.c.b16 %v647, %v643
    %v828 = vpack.c.b16 %v648, %v644
    %v829 = vpack.c.b16 %v653, %v649
    %v830 = vpack.c.b16 %v654, %v650
    %v831 = vpack.c.b16 %v655, %v651
    %v832 = vpack.c.b16 %v656, %v652
    %v833 = vpack.c.b16 %v661, %v657
    %v834 = vpack.c.b16 %v662, %v658
    %v835 = vpack.c.b16 %v663, %v659
    %v836 = vpack.c.b16 %v664, %v660
    %v837 = vpack.c.b16 %v669, %v665
    %v838 = vpack.c.b16 %v670, %v666
    %v839 = vpack.c.b16 %v671, %v667
    %v840 = vpack.c.b16 %v672, %v668
    %v841 = vpack.c.b16 %v677, %v673
    %v842 = vpack.c.b16 %v678, %v674
    %v843 = vpack.c.b16 %v679, %v675
    %v844 = vpack.c.b16 %v680, %v676
    %v845 = vpack.c.b16 %v685, %v681
    %v846 = vpack.c.b16 %v686, %v682
    %v847 = vpack.c.b16 %v687, %v683
    %v848 = vpack.c.b16 %v688, %v684
    %v849 = vpack.c.b16 %v693, %v689
    %v850 = vpack.c.b16 %v694, %v690
    %v851 = vpack.c.b16 %v695, %v691
    %v852 = vpack.c.b16 %v696, %v692
    %v853 = vpack.c.b16 %v701, %v697
    %v854 = vpack.c.b16 %v702, %v698
    %v855 = vpack.c.b16 %v703, %v699
    %v856 = vpack.c.b16 %v704, %v700
    %v857 = vpack.c.b16 %v709, %v705
    %v858 = vpack.c.b16 %v710, %v706
    %v859 = vpack.c.b16 %v711, %v707
    %v860 = vpack.c.b16 %v712, %v708
    %v861 = vpack.c.b16 %v717, %v713
    %v862 = vpack.c.b16 %v718, %v714
    %v863 = vpack.c.b16 %v719, %v715
    %v864 = vpack.c.b16 %v720, %v716
    %v865 = vpack.c.b16 %v725, %v721
    %v866 = vpack.c.b16 %v726, %v722
    %v867 = vpack.c.b16 %v727, %v723
    %v868 = vpack.c.b16 %v728, %v724
    %v869 = vpack.c.b16 %v733, %v729
    %v870 = vpack.c.b16 %v734, %v730
    %v871 = vpack.c.b16 %v735, %v731
    %v872 = vpack.c.b16 %v736, %v732
    %v873 = vpack.c.b16 %v741, %v737
    %v874 = vpack.c.b16 %v742, %v738
    %v875 = vpack.c.b16 %v743, %v739
    %v876 = vpack.c.b16 %v744, %v740
    %v877 = vpack.c.b16 %v749, %v745
    %v878 = vpack.c.b16 %v750, %v746
    %v879 = vpack.c.b16 %v751, %v747
    %v880 = vpack.c.b16 %v752, %v748
    %1009 = vmatpush.bf16.msra.mxu0 %v781
    %1010 = vmatpush.bf16.msra.mxu0 %v777
    %1011 = vmatpush.bf16.msra.mxu0 %v773
    %1012 = vmatpush.bf16.msra.mxu0 %v769
    %1013 = vmatpush.bf16.msra.mxu0 %v765
    %1014 = vmatpush.bf16.msra.mxu0 %v761
    %1015 = vmatpush.bf16.msra.mxu0 %v757
    %1016 = vmatpush.bf16.msra.mxu0 %v753
    %1017 = vmatmul.bf16.gmra.mxu0 %v166
    %v1018 = vpop.f32.mrf.mxu0
    %v1019 = vadd.f32 %v327, %v1018
    %v1020 = vpop.f32.mrf.mxu0
    %1021 = vdwg.mxu0
    %1022 = vmatpush.bf16.msra.mxu0 %v813
    %1023 = vmatpush.bf16.msra.mxu0 %v809
    %1024 = vmatpush.bf16.msra.mxu0 %v805
    %1025 = vmatpush.bf16.msra.mxu0 %v801
    %1026 = vmatpush.bf16.msra.mxu0 %v797
    %1027 = vmatpush.bf16.msra.mxu0 %v793
    %1028 = vmatpush.bf16.msra.mxu0 %v789
    %1029 = vmatpush.bf16.msra.mxu0 %v785
    %1030 = vmatmul.bf16.gmra.mxu0 %v167
    %v1031 = vpop.f32.mrf.mxu0
    %v1032 = vadd.f32 %v1019, %v1031
    %v1033 = vpop.f32.mrf.mxu0
    %1034 = vdwg.mxu0
    %1035 = vmatpush.bf16.msra.mxu0 %v845
    %1036 = vmatpush.bf16.msra.mxu0 %v841
    %1037 = vmatpush.bf16.msra.mxu0 %v837
    %1038 = vmatpush.bf16.msra.mxu0 %v833
    %1039 = vmatpush.bf16.msra.mxu0 %v829
    %1040 = vmatpush.bf16.msra.mxu0 %v825
    %1041 = vmatpush.bf16.msra.mxu0 %v821
    %1042 = vmatpush.bf16.msra.mxu0 %v817
    %1043 = vmatmul.bf16.gmra.mxu0 %v168
    %v1044 = vpop.f32.mrf.mxu0
    %v1045 = vadd.f32 %v1032, %v1044
    %v1046 = vpop.f32.mrf.mxu0
    %1047 = vdwg.mxu0
    %1048 = vmatpush.bf16.msra.mxu0 %v877
    %1049 = vmatpush.bf16.msra.mxu0 %v873
    %1050 = vmatpush.bf16.msra.mxu0 %v869
    %1051 = vmatpush.bf16.msra.mxu0 %v865
    %1052 = vmatpush.bf16.msra.mxu0 %v861
    %1053 = vmatpush.bf16.msra.mxu0 %v857
    %1054 = vmatpush.bf16.msra.mxu0 %v853
    %1055 = vmatpush.bf16.msra.mxu0 %v849
    %1056 = vmatmul.bf16.gmra.mxu0 %v169
    %v1057 = vpop.f32.mrf.mxu0
    %v1058 = vadd.f32 %v1045, %v1057
    %v1059 = vpop.f32.mrf.mxu0
    %1060 = vdwg.mxu0
    %1061 = vmatpush.bf16.msra.mxu0 %v782
    %1062 = vmatpush.bf16.msra.mxu0 %v778
    %1063 = vmatpush.bf16.msra.mxu0 %v774
    %1064 = vmatpush.bf16.msra.mxu0 %v770
    %1065 = vmatpush.bf16.msra.mxu0 %v766
    %1066 = vmatpush.bf16.msra.mxu0 %v762
    %1067 = vmatpush.bf16.msra.mxu0 %v758
    %1068 = vmatpush.bf16.msra.mxu0 %v754
    %1069 = vmatmul.bf16.gmra.mxu0 %v166
    %v1070 = vpop.f32.mrf.mxu0
    %v1071 = vadd.f32 %v340, %v1070
    %v1072 = vpop.f32.mrf.mxu0
    %1073 = vdwg.mxu0
    %1074 = vmatpush.bf16.msra.mxu0 %v814
    %1075 = vmatpush.bf16.msra.mxu0 %v810
    %1076 = vmatpush.bf16.msra.mxu0 %v806
    %1077 = vmatpush.bf16.msra.mxu0 %v802
    %1078 = vmatpush.bf16.msra.mxu0 %v798
    %1079 = vmatpush.bf16.msra.mxu0 %v794
    %1080 = vmatpush.bf16.msra.mxu0 %v790
    %1081 = vmatpush.bf16.msra.mxu0 %v786
    %1082 = vmatmul.bf16.gmra.mxu0 %v167
    %v1083 = vpop.f32.mrf.mxu0
    %v1084 = vadd.f32 %v1071, %v1083
    %v1085 = vpop.f32.mrf.mxu0
    %1086 = vdwg.mxu0
    %1087 = vmatpush.bf16.msra.mxu0 %v846
    %1088 = vmatpush.bf16.msra.mxu0 %v842
    %1089 = vmatpush.bf16.msra.mxu0 %v838
    %1090 = vmatpush.bf16.msra.mxu0 %v834
    %1091 = vmatpush.bf16.msra.mxu0 %v830
    %1092 = vmatpush.bf16.msra.mxu0 %v826
    %1093 = vmatpush.bf16.msra.mxu0 %v822
    %1094 = vmatpush.bf16.msra.mxu0 %v818
    %1095 = vmatmul.bf16.gmra.mxu0 %v168
    %v1096 = vpop.f32.mrf.mxu0
    %v1097 = vadd.f32 %v1084, %v1096
    %v1098 = vpop.f32.mrf.mxu0
    %1099 = vdwg.mxu0
    %1100 = vmatpush.bf16.msra.mxu0 %v878
    %1101 = vmatpush.bf16.msra.mxu0 %v874
    %1102 = vmatpush.bf16.msra.mxu0 %v870
    %1103 = vmatpush.bf16.msra.mxu0 %v866
    %1104 = vmatpush.bf16.msra.mxu0 %v862
    %1105 = vmatpush.bf16.msra.mxu0 %v858
    %1106 = vmatpush.bf16.msra.mxu0 %v854
    %1107 = vmatpush.bf16.msra.mxu0 %v850
    %1108 = vmatmul.bf16.gmra.mxu0 %v169
    %v1109 = vpop.f32.mrf.mxu0
    %v1110 = vadd.f32 %v1097, %v1109
    %v1111 = vpop.f32.mrf.mxu0
    %1112 = vdwg.mxu0
    %1113 = vmatpush.bf16.msra.mxu0 %v783
    %1114 = vmatpush.bf16.msra.mxu0 %v779
    %1115 = vmatpush.bf16.msra.mxu0 %v775
    %1116 = vmatpush.bf16.msra.mxu0 %v771
    %1117 = vmatpush.bf16.msra.mxu0 %v767
    %1118 = vmatpush.bf16.msra.mxu0 %v763
    %1119 = vmatpush.bf16.msra.mxu0 %v759
    %1120 = vmatpush.bf16.msra.mxu0 %v755
    %1121 = vmatmul.bf16.gmra.mxu0 %v166
    %v1122 = vpop.f32.mrf.mxu0
    %v1123 = vadd.f32 %v353, %v1122
    %v1124 = vpop.f32.mrf.mxu0
    %1125 = vdwg.mxu0
    %1126 = vmatpush.bf16.msra.mxu0 %v815
    %1127 = vmatpush.bf16.msra.mxu0 %v811
    %1128 = vmatpush.bf16.msra.mxu0 %v807
    %1129 = vmatpush.bf16.msra.mxu0 %v803
    %1130 = vmatpush.bf16.msra.mxu0 %v799
    %1131 = vmatpush.bf16.msra.mxu0 %v795
    %1132 = vmatpush.bf16.msra.mxu0 %v791
    %1133 = vmatpush.bf16.msra.mxu0 %v787
    %1134 = vmatmul.bf16.gmra.mxu0 %v167
    %v1135 = vpop.f32.mrf.mxu0
    %v1136 = vadd.f32 %v1123, %v1135
    %v1137 = vpop.f32.mrf.mxu0
    %1138 = vdwg.mxu0
    %1139 = vmatpush.bf16.msra.mxu0 %v847
    %1140 = vmatpush.bf16.msra.mxu0 %v843
    %1141 = vmatpush.bf16.msra.mxu0 %v839
    %1142 = vmatpush.bf16.msra.mxu0 %v835
    %1143 = vmatpush.bf16.msra.mxu0 %v831
    %1144 = vmatpush.bf16.msra.mxu0 %v827
    %1145 = vmatpush.bf16.msra.mxu0 %v823
    %1146 = vmatpush.bf16.msra.mxu0 %v819
    %1147 = vmatmul.bf16.gmra.mxu0 %v168
    %v1148 = vpop.f32.mrf.mxu0
    %v1149 = vadd.f32 %v1136, %v1148
    %v1150 = vpop.f32.mrf.mxu0
    %1151 = vdwg.mxu0
    %1152 = vmatpush.bf16.msra.mxu0 %v879
    %1153 = vmatpush.bf16.msra.mxu0 %v875
    %1154 = vmatpush.bf16.msra.mxu0 %v871
    %1155 = vmatpush.bf16.msra.mxu0 %v867
    %1156 = vmatpush.bf16.msra.mxu0 %v863
    %1157 = vmatpush.bf16.msra.mxu0 %v859
    %1158 = vmatpush.bf16.msra.mxu0 %v855
    %1159 = vmatpush.bf16.msra.mxu0 %v851
    %1160 = vmatmul.bf16.gmra.mxu0 %v169
    %v1161 = vpop.f32.mrf.mxu0
    %v1162 = vadd.f32 %v1149, %v1161
    %v1163 = vpop.f32.mrf.mxu0
    %1164 = vdwg.mxu0
    %1165 = vmatpush.bf16.msra.mxu0 %v784
    %1166 = vmatpush.bf16.msra.mxu0 %v780
    %1167 = vmatpush.bf16.msra.mxu0 %v776
    %1168 = vmatpush.bf16.msra.mxu0 %v772
    %1169 = vmatpush.bf16.msra.mxu0 %v768
    %1170 = vmatpush.bf16.msra.mxu0 %v764
    %1171 = vmatpush.bf16.msra.mxu0 %v760
    %1172 = vmatpush.bf16.msra.mxu0 %v756
    %1173 = vmatmul.bf16.gmra.mxu0 %v166
    %v1174 = vpop.f32.mrf.mxu0
    %v1175 = vadd.f32 %v366, %v1174
    %v1176 = vpop.f32.mrf.mxu0
    %1177 = vdwg.mxu0
    %1178 = vmatpush.bf16.msra.mxu0 %v816
    %1179 = vmatpush.bf16.msra.mxu0 %v812
    %1180 = vmatpush.bf16.msra.mxu0 %v808
    %1181 = vmatpush.bf16.msra.mxu0 %v804
    %1182 = vmatpush.bf16.msra.mxu0 %v800
    %1183 = vmatpush.bf16.msra.mxu0 %v796
    %1184 = vmatpush.bf16.msra.mxu0 %v792
    %1185 = vmatpush.bf16.msra.mxu0 %v788
    %1186 = vmatmul.bf16.gmra.mxu0 %v167
    %v1187 = vpop.f32.mrf.mxu0
    %v1188 = vadd.f32 %v1175, %v1187
    %v1189 = vpop.f32.mrf.mxu0
    %1190 = vdwg.mxu0
    %1191 = vmatpush.bf16.msra.mxu0 %v848
    %1192 = vmatpush.bf16.msra.mxu0 %v844
    %1193 = vmatpush.bf16.msra.mxu0 %v840
    %1194 = vmatpush.bf16.msra.mxu0 %v836
    %1195 = vmatpush.bf16.msra.mxu0 %v832
    %1196 = vmatpush.bf16.msra.mxu0 %v828
    %1197 = vmatpush.bf16.msra.mxu0 %v824
    %1198 = vmatpush.bf16.msra.mxu0 %v820
    %1199 = vmatmul.bf16.gmra.mxu0 %v168
    %v1200 = vpop.f32.mrf.mxu0
    %v1201 = vadd.f32 %v1188, %v1200
    %v1202 = vpop.f32.mrf.mxu0
    %1203 = vdwg.mxu0
    %1204 = vmatpush.bf16.msra.mxu0 %v880
    %1205 = vmatpush.bf16.msra.mxu0 %v876
    %1206 = vmatpush.bf16.msra.mxu0 %v872
    %1207 = vmatpush.bf16.msra.mxu0 %v868
    %1208 = vmatpush.bf16.msra.mxu0 %v864
    %1209 = vmatpush.bf16.msra.mxu0 %v860
    %1210 = vmatpush.bf16.msra.mxu0 %v856
    %1211 = vmatpush.bf16.msra.mxu0 %v852
    %1212 = vmatmul.bf16.gmra.mxu0 %v169
    %v1213 = vpop.f32.mrf.mxu0
    %v1214 = vadd.f32 %v1201, %v1213
    %v1215 = vpop.f32.mrf.mxu0
    %1216 = vdwg.mxu0
    %v1217 = vld [vmem:[%s6] sm:$0xf]
    %v1219 = vperm.slane %v1217, 0
    %v1220 = vperm.slane %v1217, 1
    %v1221 = vperm.slane %v1217, 2
    %v1222 = vperm.slane %v1217, 3
    %v1227 = vadd.f32 %v1058, %v1219
    %v1228 = vadd.f32 %v1110, %v1220
    %v1229 = vadd.f32 %v1162, %v1221
    %v1230 = vadd.f32 %v1214, %v1222
    %v1231 = vmax.f32 %v1227, 0.0
    %v1232 = vmax.f32 %v1228, 0.0
    %v1233 = vmax.f32 %v1229, 0.0
    %v1234 = vmax.f32 %v1230, 0.0
    %v1235 = vpack.c.bf16 %v1231, %v1231
    %v1236 = vpack.c.bf16 %v1232, %v1232
    %v1237 = vpack.c.bf16 %v1233, %v1233
    %v1238 = vpack.c.bf16 %v1234, %v1234
    %v1239 = vld [vmem:[#allocation5] sm:$0xff]
    %v1240 = vld [vmem:[#allocation5 + $0x8] sm:$0xff]
    %v1241 = vld [vmem:[#allocation5 + $0x10] sm:$0xff]
    %v1242 = vld [vmem:[#allocation5 + $0x18] sm:$0xff]
    %v1243 = vld [vmem:[#allocation5 + $0x20] sm:$0xff]
    %v1244 = vld [vmem:[#allocation5 + $0x28] sm:$0xff]
    %v1245 = vld [vmem:[#allocation5 + $0x30] sm:$0xff]
    %v1246 = vld [vmem:[#allocation5 + $0x38] sm:$0xff]
    %v1247 = vld [vmem:[#allocation5 + $0x40] sm:$0xff]
    %v1248 = vld [vmem:[#allocation5 + $0x48] sm:$0xff]
    %v1249 = vld [vmem:[#allocation5 + $0x50] sm:$0xff]
    %v1250 = vld [vmem:[#allocation5 + $0x58] sm:$0xff]
    %v1251 = vld [vmem:[#allocation5 + $0x60] sm:$0xff]
    %v1252 = vld [vmem:[#allocation5 + $0x68] sm:$0xff]
    %v1253 = vld [vmem:[#allocation5 + $0x70] sm:$0xff]
    %v1254 = vld [vmem:[#allocation5 + $0x78] sm:$0xff]
    %v1255 = vld [vmem:[#allocation5 + $0x80] sm:$0xff]
    %v1256 = vld [vmem:[#allocation5 + $0x88] sm:$0xff]
    %v1257 = vld [vmem:[#allocation5 + $0x90] sm:$0xff]
    %v1258 = vld [vmem:[#allocation5 + $0x98] sm:$0xff]
    %v1259 = vld [vmem:[#allocation5 + $0xa0] sm:$0xff]
    %v1260 = vld [vmem:[#allocation5 + $0xa8] sm:$0xff]
    %v1261 = vld [vmem:[#allocation5 + $0xb0] sm:$0xff]
    %v1262 = vld [vmem:[#allocation5 + $0xb8] sm:$0xff]
    %v1263 = vld [vmem:[#allocation5 + $0xc0] sm:$0xff]
    %v1264 = vld [vmem:[#allocation5 + $0xc8] sm:$0xff]
    %v1265 = vld [vmem:[#allocation5 + $0xd0] sm:$0xff]
    %v1266 = vld [vmem:[#allocation5 + $0xd8] sm:$0xff]
    %v1267 = vld [vmem:[#allocation5 + $0xe0] sm:$0xff]
    %v1268 = vld [vmem:[#allocation5 + $0xe8] sm:$0xff]
    %v1269 = vld [vmem:[#allocation5 + $0xf0] sm:$0xff]
    %v1270 = vld [vmem:[#allocation5 + $0xf8] sm:$0xff]
    %v1271 = vld [vmem:[#allocation5 + $0x100] sm:$0xff]
    %v1272 = vld [vmem:[#allocation5 + $0x108] sm:$0xff]
    %v1273 = vld [vmem:[#allocation5 + $0x110] sm:$0xff]
    %v1274 = vld [vmem:[#allocation5 + $0x118] sm:$0xff]
    %v1275 = vld [vmem:[#allocation5 + $0x120] sm:$0xff]
    %v1276 = vld [vmem:[#allocation5 + $0x128] sm:$0xff]
    %v1277 = vld [vmem:[#allocation5 + $0x130] sm:$0xff]
    %v1278 = vld [vmem:[#allocation5 + $0x138] sm:$0xff]
    %v1279 = vld [vmem:[#allocation5 + $0x140] sm:$0xff]
    %v1280 = vld [vmem:[#allocation5 + $0x148] sm:$0xff]
    %v1281 = vld [vmem:[#allocation5 + $0x150] sm:$0xff]
    %v1282 = vld [vmem:[#allocation5 + $0x158] sm:$0xff]
    %v1283 = vld [vmem:[#allocation5 + $0x160] sm:$0xff]
    %v1284 = vld [vmem:[#allocation5 + $0x168] sm:$0xff]
    %v1285 = vld [vmem:[#allocation5 + $0x170] sm:$0xff]
    %v1286 = vld [vmem:[#allocation5 + $0x178] sm:$0xff]
    %v1287 = vld [vmem:[#allocation5 + $0x180] sm:$0xff]
    %v1288 = vld [vmem:[#allocation5 + $0x188] sm:$0xff]
    %v1289 = vld [vmem:[#allocation5 + $0x190] sm:$0xff]
    %v1290 = vld [vmem:[#allocation5 + $0x198] sm:$0xff]
    %v1291 = vld [vmem:[#allocation5 + $0x1a0] sm:$0xff]
    %v1292 = vld [vmem:[#allocation5 + $0x1a8] sm:$0xff]
    %v1293 = vld [vmem:[#allocation5 + $0x1b0] sm:$0xff]
    %v1294 = vld [vmem:[#allocation5 + $0x1b8] sm:$0xff]
    %v1295 = vld [vmem:[#allocation5 + $0x1c0] sm:$0xff]
    %v1296 = vld [vmem:[#allocation5 + $0x1c8] sm:$0xff]
    %v1297 = vld [vmem:[#allocation5 + $0x1d0] sm:$0xff]
    %v1298 = vld [vmem:[#allocation5 + $0x1d8] sm:$0xff]
    %v1299 = vld [vmem:[#allocation5 + $0x1e0] sm:$0xff]
    %v1300 = vld [vmem:[#allocation5 + $0x1e8] sm:$0xff]
    %v1301 = vld [vmem:[#allocation5 + $0x1f0] sm:$0xff]
    %v1302 = vld [vmem:[#allocation5 + $0x1f8] sm:$0xff]
    %v1303 = vld [vmem:[#allocation5 + $0x200] sm:$0xff]
    %v1304 = vld [vmem:[#allocation5 + $0x208] sm:$0xff]
    %v1305 = vld [vmem:[#allocation5 + $0x210] sm:$0xff]
    %v1306 = vld [vmem:[#allocation5 + $0x218] sm:$0xff]
    %v1307 = vld [vmem:[#allocation5 + $0x220] sm:$0xff]
    %v1308 = vld [vmem:[#allocation5 + $0x228] sm:$0xff]
    %v1309 = vld [vmem:[#allocation5 + $0x230] sm:$0xff]
    %v1310 = vld [vmem:[#allocation5 + $0x238] sm:$0xff]
    %v1311 = vld [vmem:[#allocation5 + $0x240] sm:$0xff]
    %v1312 = vld [vmem:[#allocation5 + $0x248] sm:$0xff]
    %v1313 = vld [vmem:[#allocation5 + $0x250] sm:$0xff]
    %v1314 = vld [vmem:[#allocation5 + $0x258] sm:$0xff]
    %v1315 = vld [vmem:[#allocation5 + $0x260] sm:$0xff]
    %v1316 = vld [vmem:[#allocation5 + $0x268] sm:$0xff]
    %v1317 = vld [vmem:[#allocation5 + $0x270] sm:$0xff]
    %v1318 = vld [vmem:[#allocation5 + $0x278] sm:$0xff]
    %v1319 = vld [vmem:[#allocation5 + $0x280] sm:$0xff]
    %v1320 = vld [vmem:[#allocation5 + $0x288] sm:$0xff]
    %v1321 = vld [vmem:[#allocation5 + $0x290] sm:$0xff]
    %v1322 = vld [vmem:[#allocation5 + $0x298] sm:$0xff]
    %v1323 = vld [vmem:[#allocation5 + $0x2a0] sm:$0xff]
    %v1324 = vld [vmem:[#allocation5 + $0x2a8] sm:$0xff]
    %v1325 = vld [vmem:[#allocation5 + $0x2b0] sm:$0xff]
    %v1326 = vld [vmem:[#allocation5 + $0x2b8] sm:$0xff]
    %v1327 = vld [vmem:[#allocation5 + $0x2c0] sm:$0xff]
    %v1328 = vld [vmem:[#allocation5 + $0x2c8] sm:$0xff]
    %v1329 = vld [vmem:[#allocation5 + $0x2d0] sm:$0xff]
    %v1330 = vld [vmem:[#allocation5 + $0x2d8] sm:$0xff]
    %v1331 = vld [vmem:[#allocation5 + $0x2e0] sm:$0xff]
    %v1332 = vld [vmem:[#allocation5 + $0x2e8] sm:$0xff]
    %v1333 = vld [vmem:[#allocation5 + $0x2f0] sm:$0xff]
    %v1334 = vld [vmem:[#allocation5 + $0x2f8] sm:$0xff]
    %v1335 = vld [vmem:[#allocation5 + $0x300] sm:$0xff]
    %v1336 = vld [vmem:[#allocation5 + $0x308] sm:$0xff]
    %v1337 = vld [vmem:[#allocation5 + $0x310] sm:$0xff]
    %v1338 = vld [vmem:[#allocation5 + $0x318] sm:$0xff]
    %v1339 = vld [vmem:[#allocation5 + $0x320] sm:$0xff]
    %v1340 = vld [vmem:[#allocation5 + $0x328] sm:$0xff]
    %v1341 = vld [vmem:[#allocation5 + $0x330] sm:$0xff]
    %v1342 = vld [vmem:[#allocation5 + $0x338] sm:$0xff]
    %v1343 = vld [vmem:[#allocation5 + $0x340] sm:$0xff]
    %v1344 = vld [vmem:[#allocation5 + $0x348] sm:$0xff]
    %v1345 = vld [vmem:[#allocation5 + $0x350] sm:$0xff]
    %v1346 = vld [vmem:[#allocation5 + $0x358] sm:$0xff]
    %v1347 = vld [vmem:[#allocation5 + $0x360] sm:$0xff]
    %v1348 = vld [vmem:[#allocation5 + $0x368] sm:$0xff]
    %v1349 = vld [vmem:[#allocation5 + $0x370] sm:$0xff]
    %v1350 = vld [vmem:[#allocation5 + $0x378] sm:$0xff]
    %v1351 = vld [vmem:[#allocation5 + $0x380] sm:$0xff]
    %v1352 = vld [vmem:[#allocation5 + $0x388] sm:$0xff]
    %v1353 = vld [vmem:[#allocation5 + $0x390] sm:$0xff]
    %v1354 = vld [vmem:[#allocation5 + $0x398] sm:$0xff]
    %v1355 = vld [vmem:[#allocation5 + $0x3a0] sm:$0xff]
    %v1356 = vld [vmem:[#allocation5 + $0x3a8] sm:$0xff]
    %v1357 = vld [vmem:[#allocation5 + $0x3b0] sm:$0xff]
    %v1358 = vld [vmem:[#allocation5 + $0x3b8] sm:$0xff]
    %v1359 = vld [vmem:[#allocation5 + $0x3c0] sm:$0xff]
    %v1360 = vld [vmem:[#allocation5 + $0x3c8] sm:$0xff]
    %v1361 = vld [vmem:[#allocation5 + $0x3d0] sm:$0xff]
    %v1362 = vld [vmem:[#allocation5 + $0x3d8] sm:$0xff]
    %v1363 = vld [vmem:[#allocation5 + $0x3e0] sm:$0xff]
    %v1364 = vld [vmem:[#allocation5 + $0x3e8] sm:$0xff]
    %v1365 = vld [vmem:[#allocation5 + $0x3f0] sm:$0xff]
    %v1366 = vld [vmem:[#allocation5 + $0x3f8] sm:$0xff]
    %v1367 = vld [vmem:[%s8] sm:$0xf]
    %v1369 = vperm.slane %v1367, 0
    %v1370 = vperm.slane %v1367, 1
    %v1371 = vperm.slane %v1367, 2
    %v1372 = vperm.slane %v1367, 3
    %v1505 = vunpack.c.l.b16 %v1239
    %v1506 = vunpack.c.h.b16 %v1239
    %v1507 = vunpack.c.l.b16 %v1240
    %v1508 = vunpack.c.h.b16 %v1240
    %v1509 = vunpack.c.l.b16 %v1241
    %v1510 = vunpack.c.h.b16 %v1241
    %v1511 = vunpack.c.l.b16 %v1242
    %v1512 = vunpack.c.h.b16 %v1242
    %v1513 = vunpack.c.l.b16 %v1243
    %v1514 = vunpack.c.h.b16 %v1243
    %v1515 = vunpack.c.l.b16 %v1244
    %v1516 = vunpack.c.h.b16 %v1244
    %v1517 = vunpack.c.l.b16 %v1245
    %v1518 = vunpack.c.h.b16 %v1245
    %v1519 = vunpack.c.l.b16 %v1246
    %v1520 = vunpack.c.h.b16 %v1246
    %v1521 = vunpack.c.l.b16 %v1247
    %v1522 = vunpack.c.h.b16 %v1247
    %v1523 = vunpack.c.l.b16 %v1248
    %v1524 = vunpack.c.h.b16 %v1248
    %v1525 = vunpack.c.l.b16 %v1249
    %v1526 = vunpack.c.h.b16 %v1249
    %v1527 = vunpack.c.l.b16 %v1250
    %v1528 = vunpack.c.h.b16 %v1250
    %v1529 = vunpack.c.l.b16 %v1251
    %v1530 = vunpack.c.h.b16 %v1251
    %v1531 = vunpack.c.l.b16 %v1252
    %v1532 = vunpack.c.h.b16 %v1252
    %v1533 = vunpack.c.l.b16 %v1253
    %v1534 = vunpack.c.h.b16 %v1253
    %v1535 = vunpack.c.l.b16 %v1254
    %v1536 = vunpack.c.h.b16 %v1254
    %v1537 = vunpack.c.l.b16 %v1255
    %v1538 = vunpack.c.h.b16 %v1255
    %v1539 = vunpack.c.l.b16 %v1256
    %v1540 = vunpack.c.h.b16 %v1256
    %v1541 = vunpack.c.l.b16 %v1257
    %v1542 = vunpack.c.h.b16 %v1257
    %v1543 = vunpack.c.l.b16 %v1258
    %v1544 = vunpack.c.h.b16 %v1258
    %v1545 = vunpack.c.l.b16 %v1259
    %v1546 = vunpack.c.h.b16 %v1259
    %v1547 = vunpack.c.l.b16 %v1260
    %v1548 = vunpack.c.h.b16 %v1260
    %v1549 = vunpack.c.l.b16 %v1261
    %v1550 = vunpack.c.h.b16 %v1261
    %v1551 = vunpack.c.l.b16 %v1262
    %v1552 = vunpack.c.h.b16 %v1262
    %v1553 = vunpack.c.l.b16 %v1263
    %v1554 = vunpack.c.h.b16 %v1263
    %v1555 = vunpack.c.l.b16 %v1264
    %v1556 = vunpack.c.h.b16 %v1264
    %v1557 = vunpack.c.l.b16 %v1265
    %v1558 = vunpack.c.h.b16 %v1265
    %v1559 = vunpack.c.l.b16 %v1266
    %v1560 = vunpack.c.h.b16 %v1266
    %v1561 = vunpack.c.l.b16 %v1267
    %v1562 = vunpack.c.h.b16 %v1267
    %v1563 = vunpack.c.l.b16 %v1268
    %v1564 = vunpack.c.h.b16 %v1268
    %v1565 = vunpack.c.l.b16 %v1269
    %v1566 = vunpack.c.h.b16 %v1269
    %v1567 = vunpack.c.l.b16 %v1270
    %v1568 = vunpack.c.h.b16 %v1270
    %v1569 = vunpack.c.l.b16 %v1271
    %v1570 = vunpack.c.h.b16 %v1271
    %v1571 = vunpack.c.l.b16 %v1272
    %v1572 = vunpack.c.h.b16 %v1272
    %v1573 = vunpack.c.l.b16 %v1273
    %v1574 = vunpack.c.h.b16 %v1273
    %v1575 = vunpack.c.l.b16 %v1274
    %v1576 = vunpack.c.h.b16 %v1274
    %v1577 = vunpack.c.l.b16 %v1275
    %v1578 = vunpack.c.h.b16 %v1275
    %v1579 = vunpack.c.l.b16 %v1276
    %v1580 = vunpack.c.h.b16 %v1276
    %v1581 = vunpack.c.l.b16 %v1277
    %v1582 = vunpack.c.h.b16 %v1277
    %v1583 = vunpack.c.l.b16 %v1278
    %v1584 = vunpack.c.h.b16 %v1278
    %v1585 = vunpack.c.l.b16 %v1279
    %v1586 = vunpack.c.h.b16 %v1279
    %v1587 = vunpack.c.l.b16 %v1280
    %v1588 = vunpack.c.h.b16 %v1280
    %v1589 = vunpack.c.l.b16 %v1281
    %v1590 = vunpack.c.h.b16 %v1281
    %v1591 = vunpack.c.l.b16 %v1282
    %v1592 = vunpack.c.h.b16 %v1282
    %v1593 = vunpack.c.l.b16 %v1283
    %v1594 = vunpack.c.h.b16 %v1283
    %v1595 = vunpack.c.l.b16 %v1284
    %v1596 = vunpack.c.h.b16 %v1284
    %v1597 = vunpack.c.l.b16 %v1285
    %v1598 = vunpack.c.h.b16 %v1285
    %v1599 = vunpack.c.l.b16 %v1286
    %v1600 = vunpack.c.h.b16 %v1286
    %v1601 = vunpack.c.l.b16 %v1287
    %v1602 = vunpack.c.h.b16 %v1287
    %v1603 = vunpack.c.l.b16 %v1288
    %v1604 = vunpack.c.h.b16 %v1288
    %v1605 = vunpack.c.l.b16 %v1289
    %v1606 = vunpack.c.h.b16 %v1289
    %v1607 = vunpack.c.l.b16 %v1290
    %v1608 = vunpack.c.h.b16 %v1290
    %v1609 = vunpack.c.l.b16 %v1291
    %v1610 = vunpack.c.h.b16 %v1291
    %v1611 = vunpack.c.l.b16 %v1292
    %v1612 = vunpack.c.h.b16 %v1292
    %v1613 = vunpack.c.l.b16 %v1293
    %v1614 = vunpack.c.h.b16 %v1293
    %v1615 = vunpack.c.l.b16 %v1294
    %v1616 = vunpack.c.h.b16 %v1294
    %v1617 = vunpack.c.l.b16 %v1295
    %v1618 = vunpack.c.h.b16 %v1295
    %v1619 = vunpack.c.l.b16 %v1296
    %v1620 = vunpack.c.h.b16 %v1296
    %v1621 = vunpack.c.l.b16 %v1297
    %v1622 = vunpack.c.h.b16 %v1297
    %v1623 = vunpack.c.l.b16 %v1298
    %v1624 = vunpack.c.h.b16 %v1298
    %v1625 = vunpack.c.l.b16 %v1299
    %v1626 = vunpack.c.h.b16 %v1299
    %v1627 = vunpack.c.l.b16 %v1300
    %v1628 = vunpack.c.h.b16 %v1300
    %v1629 = vunpack.c.l.b16 %v1301
    %v1630 = vunpack.c.h.b16 %v1301
    %v1631 = vunpack.c.l.b16 %v1302
    %v1632 = vunpack.c.h.b16 %v1302
    %v1633 = vunpack.c.l.b16 %v1303
    %v1634 = vunpack.c.h.b16 %v1303
    %v1635 = vunpack.c.l.b16 %v1304
    %v1636 = vunpack.c.h.b16 %v1304
    %v1637 = vunpack.c.l.b16 %v1305
    %v1638 = vunpack.c.h.b16 %v1305
    %v1639 = vunpack.c.l.b16 %v1306
    %v1640 = vunpack.c.h.b16 %v1306
    %v1641 = vunpack.c.l.b16 %v1307
    %v1642 = vunpack.c.h.b16 %v1307
    %v1643 = vunpack.c.l.b16 %v1308
    %v1644 = vunpack.c.h.b16 %v1308
    %v1645 = vunpack.c.l.b16 %v1309
    %v1646 = vunpack.c.h.b16 %v1309
    %v1647 = vunpack.c.l.b16 %v1310
    %v1648 = vunpack.c.h.b16 %v1310
    %v1649 = vunpack.c.l.b16 %v1311
    %v1650 = vunpack.c.h.b16 %v1311
    %v1651 = vunpack.c.l.b16 %v1312
    %v1652 = vunpack.c.h.b16 %v1312
    %v1653 = vunpack.c.l.b16 %v1313
    %v1654 = vunpack.c.h.b16 %v1313
    %v1655 = vunpack.c.l.b16 %v1314
    %v1656 = vunpack.c.h.b16 %v1314
    %v1657 = vunpack.c.l.b16 %v1315
    %v1658 = vunpack.c.h.b16 %v1315
    %v1659 = vunpack.c.l.b16 %v1316
    %v1660 = vunpack.c.h.b16 %v1316
    %v1661 = vunpack.c.l.b16 %v1317
    %v1662 = vunpack.c.h.b16 %v1317
    %v1663 = vunpack.c.l.b16 %v1318
    %v1664 = vunpack.c.h.b16 %v1318
    %v1665 = vunpack.c.l.b16 %v1319
    %v1666 = vunpack.c.h.b16 %v1319
    %v1667 = vunpack.c.l.b16 %v1320
    %v1668 = vunpack.c.h.b16 %v1320
    %v1669 = vunpack.c.l.b16 %v1321
    %v1670 = vunpack.c.h.b16 %v1321
    %v1671 = vunpack.c.l.b16 %v1322
    %v1672 = vunpack.c.h.b16 %v1322
    %v1673 = vunpack.c.l.b16 %v1323
    %v1674 = vunpack.c.h.b16 %v1323
    %v1675 = vunpack.c.l.b16 %v1324
    %v1676 = vunpack.c.h.b16 %v1324
    %v1677 = vunpack.c.l.b16 %v1325
    %v1678 = vunpack.c.h.b16 %v1325
    %v1679 = vunpack.c.l.b16 %v1326
    %v1680 = vunpack.c.h.b16 %v1326
    %v1681 = vunpack.c.l.b16 %v1327
    %v1682 = vunpack.c.h.b16 %v1327
    %v1683 = vunpack.c.l.b16 %v1328
    %v1684 = vunpack.c.h.b16 %v1328
    %v1685 = vunpack.c.l.b16 %v1329
    %v1686 = vunpack.c.h.b16 %v1329
    %v1687 = vunpack.c.l.b16 %v1330
    %v1688 = vunpack.c.h.b16 %v1330
    %v1689 = vunpack.c.l.b16 %v1331
    %v1690 = vunpack.c.h.b16 %v1331
    %v1691 = vunpack.c.l.b16 %v1332
    %v1692 = vunpack.c.h.b16 %v1332
    %v1693 = vunpack.c.l.b16 %v1333
    %v1694 = vunpack.c.h.b16 %v1333
    %v1695 = vunpack.c.l.b16 %v1334
    %v1696 = vunpack.c.h.b16 %v1334
    %v1697 = vunpack.c.l.b16 %v1335
    %v1698 = vunpack.c.h.b16 %v1335
    %v1699 = vunpack.c.l.b16 %v1336
    %v1700 = vunpack.c.h.b16 %v1336
    %v1701 = vunpack.c.l.b16 %v1337
    %v1702 = vunpack.c.h.b16 %v1337
    %v1703 = vunpack.c.l.b16 %v1338
    %v1704 = vunpack.c.h.b16 %v1338
    %v1705 = vunpack.c.l.b16 %v1339
    %v1706 = vunpack.c.h.b16 %v1339
    %v1707 = vunpack.c.l.b16 %v1340
    %v1708 = vunpack.c.h.b16 %v1340
    %v1709 = vunpack.c.l.b16 %v1341
    %v1710 = vunpack.c.h.b16 %v1341
    %v1711 = vunpack.c.l.b16 %v1342
    %v1712 = vunpack.c.h.b16 %v1342
    %v1713 = vunpack.c.l.b16 %v1343
    %v1714 = vunpack.c.h.b16 %v1343
    %v1715 = vunpack.c.l.b16 %v1344
    %v1716 = vunpack.c.h.b16 %v1344
    %v1717 = vunpack.c.l.b16 %v1345
    %v1718 = vunpack.c.h.b16 %v1345
    %v1719 = vunpack.c.l.b16 %v1346
    %v1720 = vunpack.c.h.b16 %v1346
    %v1721 = vunpack.c.l.b16 %v1347
    %v1722 = vunpack.c.h.b16 %v1347
    %v1723 = vunpack.c.l.b16 %v1348
    %v1724 = vunpack.c.h.b16 %v1348
    %v1725 = vunpack.c.l.b16 %v1349
    %v1726 = vunpack.c.h.b16 %v1349
    %v1727 = vunpack.c.l.b16 %v1350
    %v1728 = vunpack.c.h.b16 %v1350
    %v1729 = vunpack.c.l.b16 %v1351
    %v1730 = vunpack.c.h.b16 %v1351
    %v1731 = vunpack.c.l.b16 %v1352
    %v1732 = vunpack.c.h.b16 %v1352
    %v1733 = vunpack.c.l.b16 %v1353
    %v1734 = vunpack.c.h.b16 %v1353
    %v1735 = vunpack.c.l.b16 %v1354
    %v1736 = vunpack.c.h.b16 %v1354
    %v1737 = vunpack.c.l.b16 %v1355
    %v1738 = vunpack.c.h.b16 %v1355
    %v1739 = vunpack.c.l.b16 %v1356
    %v1740 = vunpack.c.h.b16 %v1356
    %v1741 = vunpack.c.l.b16 %v1357
    %v1742 = vunpack.c.h.b16 %v1357
    %v1743 = vunpack.c.l.b16 %v1358
    %v1744 = vunpack.c.h.b16 %v1358
    %v1745 = vunpack.c.l.b16 %v1359
    %v1746 = vunpack.c.h.b16 %v1359
    %v1747 = vunpack.c.l.b16 %v1360
    %v1748 = vunpack.c.h.b16 %v1360
    %v1749 = vunpack.c.l.b16 %v1361
    %v1750 = vunpack.c.h.b16 %v1361
    %v1751 = vunpack.c.l.b16 %v1362
    %v1752 = vunpack.c.h.b16 %v1362
    %v1753 = vunpack.c.l.b16 %v1363
    %v1754 = vunpack.c.h.b16 %v1363
    %v1755 = vunpack.c.l.b16 %v1364
    %v1756 = vunpack.c.h.b16 %v1364
    %v1757 = vunpack.c.l.b16 %v1365
    %v1758 = vunpack.c.h.b16 %v1365
    %v1759 = vunpack.c.l.b16 %v1366
    %v1760 = vunpack.c.h.b16 %v1366
    %v1761 = vpack.c.b16 %v1509, %v1505
    %v1762 = vpack.c.b16 %v1510, %v1506
    %v1763 = vpack.c.b16 %v1511, %v1507
    %v1764 = vpack.c.b16 %v1512, %v1508
    %v1765 = vpack.c.b16 %v1517, %v1513
    %v1766 = vpack.c.b16 %v1518, %v1514
    %v1767 = vpack.c.b16 %v1519, %v1515
    %v1768 = vpack.c.b16 %v1520, %v1516
    %v1769 = vpack.c.b16 %v1525, %v1521
    %v1770 = vpack.c.b16 %v1526, %v1522
    %v1771 = vpack.c.b16 %v1527, %v1523
    %v1772 = vpack.c.b16 %v1528, %v1524
    %v1773 = vpack.c.b16 %v1533, %v1529
    %v1774 = vpack.c.b16 %v1534, %v1530
    %v1775 = vpack.c.b16 %v1535, %v1531
    %v1776 = vpack.c.b16 %v1536, %v1532
    %v1777 = vpack.c.b16 %v1541, %v1537
    %v1778 = vpack.c.b16 %v1542, %v1538
    %v1779 = vpack.c.b16 %v1543, %v1539
    %v1780 = vpack.c.b16 %v1544, %v1540
    %v1781 = vpack.c.b16 %v1549, %v1545
    %v1782 = vpack.c.b16 %v1550, %v1546
    %v1783 = vpack.c.b16 %v1551, %v1547
    %v1784 = vpack.c.b16 %v1552, %v1548
    %v1785 = vpack.c.b16 %v1557, %v1553
    %v1786 = vpack.c.b16 %v1558, %v1554
    %v1787 = vpack.c.b16 %v1559, %v1555
    %v1788 = vpack.c.b16 %v1560, %v1556
    %v1789 = vpack.c.b16 %v1565, %v1561
    %v1790 = vpack.c.b16 %v1566, %v1562
    %v1791 = vpack.c.b16 %v1567, %v1563
    %v1792 = vpack.c.b16 %v1568, %v1564
    %v1793 = vpack.c.b16 %v1573, %v1569
    %v1794 = vpack.c.b16 %v1574, %v1570
    %v1795 = vpack.c.b16 %v1575, %v1571
    %v1796 = vpack.c.b16 %v1576, %v1572
    %v1797 = vpack.c.b16 %v1581, %v1577
    %v1798 = vpack.c.b16 %v1582, %v1578
    %v1799 = vpack.c.b16 %v1583, %v1579
    %v1800 = vpack.c.b16 %v1584, %v1580
    %v1801 = vpack.c.b16 %v1589, %v1585
    %v1802 = vpack.c.b16 %v1590, %v1586
    %v1803 = vpack.c.b16 %v1591, %v1587
    %v1804 = vpack.c.b16 %v1592, %v1588
    %v1805 = vpack.c.b16 %v1597, %v1593
    %v1806 = vpack.c.b16 %v1598, %v1594
    %v1807 = vpack.c.b16 %v1599, %v1595
    %v1808 = vpack.c.b16 %v1600, %v1596
    %v1809 = vpack.c.b16 %v1605, %v1601
    %v1810 = vpack.c.b16 %v1606, %v1602
    %v1811 = vpack.c.b16 %v1607, %v1603
    %v1812 = vpack.c.b16 %v1608, %v1604
    %v1813 = vpack.c.b16 %v1613, %v1609
    %v1814 = vpack.c.b16 %v1614, %v1610
    %v1815 = vpack.c.b16 %v1615, %v1611
    %v1816 = vpack.c.b16 %v1616, %v1612
    %v1817 = vpack.c.b16 %v1621, %v1617
    %v1818 = vpack.c.b16 %v1622, %v1618
    %v1819 = vpack.c.b16 %v1623, %v1619
    %v1820 = vpack.c.b16 %v1624, %v1620
    %v1821 = vpack.c.b16 %v1629, %v1625
    %v1822 = vpack.c.b16 %v1630, %v1626
    %v1823 = vpack.c.b16 %v1631, %v1627
    %v1824 = vpack.c.b16 %v1632, %v1628
    %v1825 = vpack.c.b16 %v1637, %v1633
    %v1826 = vpack.c.b16 %v1638, %v1634
    %v1827 = vpack.c.b16 %v1639, %v1635
    %v1828 = vpack.c.b16 %v1640, %v1636
    %v1829 = vpack.c.b16 %v1645, %v1641
    %v1830 = vpack.c.b16 %v1646, %v1642
    %v1831 = vpack.c.b16 %v1647, %v1643
    %v1832 = vpack.c.b16 %v1648, %v1644
    %v1833 = vpack.c.b16 %v1653, %v1649
    %v1834 = vpack.c.b16 %v1654, %v1650
    %v1835 = vpack.c.b16 %v1655, %v1651
    %v1836 = vpack.c.b16 %v1656, %v1652
    %v1837 = vpack.c.b16 %v1661, %v1657
    %v1838 = vpack.c.b16 %v1662, %v1658
    %v1839 = vpack.c.b16 %v1663, %v1659
    %v1840 = vpack.c.b16 %v1664, %v1660
    %v1841 = vpack.c.b16 %v1669, %v1665
    %v1842 = vpack.c.b16 %v1670, %v1666
    %v1843 = vpack.c.b16 %v1671, %v1667
    %v1844 = vpack.c.b16 %v1672, %v1668
    %v1845 = vpack.c.b16 %v1677, %v1673
    %v1846 = vpack.c.b16 %v1678, %v1674
    %v1847 = vpack.c.b16 %v1679, %v1675
    %v1848 = vpack.c.b16 %v1680, %v1676
    %v1849 = vpack.c.b16 %v1685, %v1681
    %v1850 = vpack.c.b16 %v1686, %v1682
    %v1851 = vpack.c.b16 %v1687, %v1683
    %v1852 = vpack.c.b16 %v1688, %v1684
    %v1853 = vpack.c.b16 %v1693, %v1689
    %v1854 = vpack.c.b16 %v1694, %v1690
    %v1855 = vpack.c.b16 %v1695, %v1691
    %v1856 = vpack.c.b16 %v1696, %v1692
    %v1857 = vpack.c.b16 %v1701, %v1697
    %v1858 = vpack.c.b16 %v1702, %v1698
    %v1859 = vpack.c.b16 %v1703, %v1699
    %v1860 = vpack.c.b16 %v1704, %v1700
    %v1861 = vpack.c.b16 %v1709, %v1705
    %v1862 = vpack.c.b16 %v1710, %v1706
    %v1863 = vpack.c.b16 %v1711, %v1707
    %v1864 = vpack.c.b16 %v1712, %v1708
    %v1865 = vpack.c.b16 %v1717, %v1713
    %v1866 = vpack.c.b16 %v1718, %v1714
    %v1867 = vpack.c.b16 %v1719, %v1715
    %v1868 = vpack.c.b16 %v1720, %v1716
    %v1869 = vpack.c.b16 %v1725, %v1721
    %v1870 = vpack.c.b16 %v1726, %v1722
    %v1871 = vpack.c.b16 %v1727, %v1723
    %v1872 = vpack.c.b16 %v1728, %v1724
    %v1873 = vpack.c.b16 %v1733, %v1729
    %v1874 = vpack.c.b16 %v1734, %v1730
    %v1875 = vpack.c.b16 %v1735, %v1731
    %v1876 = vpack.c.b16 %v1736, %v1732
    %v1877 = vpack.c.b16 %v1741, %v1737
    %v1878 = vpack.c.b16 %v1742, %v1738
    %v1879 = vpack.c.b16 %v1743, %v1739
    %v1880 = vpack.c.b16 %v1744, %v1740
    %v1881 = vpack.c.b16 %v1749, %v1745
    %v1882 = vpack.c.b16 %v1750, %v1746
    %v1883 = vpack.c.b16 %v1751, %v1747
    %v1884 = vpack.c.b16 %v1752, %v1748
    %v1885 = vpack.c.b16 %v1757, %v1753
    %v1886 = vpack.c.b16 %v1758, %v1754
    %v1887 = vpack.c.b16 %v1759, %v1755
    %v1888 = vpack.c.b16 %v1760, %v1756
    %2017 = vmatpush.bf16.msra.mxu0 %v1789
    %2018 = vmatpush.bf16.msra.mxu0 %v1785
    %2019 = vmatpush.bf16.msra.mxu0 %v1781
    %2020 = vmatpush.bf16.msra.mxu0 %v1777
    %2021 = vmatpush.bf16.msra.mxu0 %v1773
    %2022 = vmatpush.bf16.msra.mxu0 %v1769
    %2023 = vmatpush.bf16.msra.mxu0 %v1765
    %2024 = vmatpush.bf16.msra.mxu0 %v1761
    %2025 = vmatmul.bf16.gmra.mxu0 %v1235
    %v2026 = vpop.f32.mrf.mxu0
    %v2027 = vadd.f32 %v1369, %v2026
    %v2028 = vpop.f32.mrf.mxu0
    %2029 = vdwg.mxu0
    %2030 = vmatpush.bf16.msra.mxu0 %v1821
    %2031 = vmatpush.bf16.msra.mxu0 %v1817
    %2032 = vmatpush.bf16.msra.mxu0 %v1813
    %2033 = vmatpush.bf16.msra.mxu0 %v1809
    %2034 = vmatpush.bf16.msra.mxu0 %v1805
    %2035 = vmatpush.bf16.msra.mxu0 %v1801
    %2036 = vmatpush.bf16.msra.mxu0 %v1797
    %2037 = vmatpush.bf16.msra.mxu0 %v1793
    %2038 = vmatmul.bf16.gmra.mxu0 %v1236
    %v2039 = vpop.f32.mrf.mxu0
    %v2040 = vadd.f32 %v2027, %v2039
    %v2041 = vpop.f32.mrf.mxu0
    %2042 = vdwg.mxu0
    %2043 = vmatpush.bf16.msra.mxu0 %v1853
    %2044 = vmatpush.bf16.msra.mxu0 %v1849
    %2045 = vmatpush.bf16.msra.mxu0 %v1845
    %2046 = vmatpush.bf16.msra.mxu0 %v1841
    %2047 = vmatpush.bf16.msra.mxu0 %v1837
    %2048 = vmatpush.bf16.msra.mxu0 %v1833
    %2049 = vmatpush.bf16.msra.mxu0 %v1829
    %2050 = vmatpush.bf16.msra.mxu0 %v1825
    %2051 = vmatmul.bf16.gmra.mxu0 %v1237
    %v2052 = vpop.f32.mrf.mxu0
    %v2053 = vadd.f32 %v2040, %v2052
    %v2054 = vpop.f32.mrf.mxu0
    %2055 = vdwg.mxu0
    %2056 = vmatpush.bf16.msra.mxu0 %v1885
    %2057 = vmatpush.bf16.msra.mxu0 %v1881
    %2058 = vmatpush.bf16.msra.mxu0 %v1877
    %2059 = vmatpush.bf16.msra.mxu0 %v1873
    %2060 = vmatpush.bf16.msra.mxu0 %v1869
    %2061 = vmatpush.bf16.msra.mxu0 %v1865
    %2062 = vmatpush.bf16.msra.mxu0 %v1861
    %2063 = vmatpush.bf16.msra.mxu0 %v1857
    %2064 = vmatmul.bf16.gmra.mxu0 %v1238
    %v2065 = vpop.f32.mrf.mxu0
    %v2066 = vadd.f32 %v2053, %v2065
    %v2067 = vpop.f32.mrf.mxu0
    %2068 = vdwg.mxu0
    %2069 = vmatpush.bf16.msra.mxu0 %v1790
    %2070 = vmatpush.bf16.msra.mxu0 %v1786
    %2071 = vmatpush.bf16.msra.mxu0 %v1782
    %2072 = vmatpush.bf16.msra.mxu0 %v1778
    %2073 = vmatpush.bf16.msra.mxu0 %v1774
    %2074 = vmatpush.bf16.msra.mxu0 %v1770
    %2075 = vmatpush.bf16.msra.mxu0 %v1766
    %2076 = vmatpush.bf16.msra.mxu0 %v1762
    %2077 = vmatmul.bf16.gmra.mxu0 %v1235
    %v2078 = vpop.f32.mrf.mxu0
    %v2079 = vadd.f32 %v1370, %v2078
    %v2080 = vpop.f32.mrf.mxu0
    %2081 = vdwg.mxu0
    %2082 = vmatpush.bf16.msra.mxu0 %v1822
    %2083 = vmatpush.bf16.msra.mxu0 %v1818
    %2084 = vmatpush.bf16.msra.mxu0 %v1814
    %2085 = vmatpush.bf16.msra.mxu0 %v1810
    %2086 = vmatpush.bf16.msra.mxu0 %v1806
    %2087 = vmatpush.bf16.msra.mxu0 %v1802
    %2088 = vmatpush.bf16.msra.mxu0 %v1798
    %2089 = vmatpush.bf16.msra.mxu0 %v1794
    %2090 = vmatmul.bf16.gmra.mxu0 %v1236
    %v2091 = vpop.f32.mrf.mxu0
    %v2092 = vadd.f32 %v2079, %v2091
    %v2093 = vpop.f32.mrf.mxu0
    %2094 = vdwg.mxu0
    %2095 = vmatpush.bf16.msra.mxu0 %v1854
    %2096 = vmatpush.bf16.msra.mxu0 %v1850
    %2097 = vmatpush.bf16.msra.mxu0 %v1846
    %2098 = vmatpush.bf16.msra.mxu0 %v1842
    %2099 = vmatpush.bf16.msra.mxu0 %v1838
    %2100 = vmatpush.bf16.msra.mxu0 %v1834
    %2101 = vmatpush.bf16.msra.mxu0 %v1830
    %2102 = vmatpush.bf16.msra.mxu0 %v1826
    %2103 = vmatmul.bf16.gmra.mxu0 %v1237
    %v2104 = vpop.f32.mrf.mxu0
    %v2105 = vadd.f32 %v2092, %v2104
    %v2106 = vpop.f32.mrf.mxu0
    %2107 = vdwg.mxu0
    %2108 = vmatpush.bf16.msra.mxu0 %v1886
    %2109 = vmatpush.bf16.msra.mxu0 %v1882
    %2110 = vmatpush.bf16.msra.mxu0 %v1878
    %2111 = vmatpush.bf16.msra.mxu0 %v1874
    %2112 = vmatpush.bf16.msra.mxu0 %v1870
    %2113 = vmatpush.bf16.msra.mxu0 %v1866
    %2114 = vmatpush.bf16.msra.mxu0 %v1862
    %2115 = vmatpush.bf16.msra.mxu0 %v1858
    %2116 = vmatmul.bf16.gmra.mxu0 %v1238
    %v2117 = vpop.f32.mrf.mxu0
    %v2118 = vadd.f32 %v2105, %v2117
    %v2119 = vpop.f32.mrf.mxu0
    %2120 = vdwg.mxu0
    %2121 = vmatpush.bf16.msra.mxu0 %v1791
    %2122 = vmatpush.bf16.msra.mxu0 %v1787
    %2123 = vmatpush.bf16.msra.mxu0 %v1783
    %2124 = vmatpush.bf16.msra.mxu0 %v1779
    %2125 = vmatpush.bf16.msra.mxu0 %v1775
    %2126 = vmatpush.bf16.msra.mxu0 %v1771
    %2127 = vmatpush.bf16.msra.mxu0 %v1767
    %2128 = vmatpush.bf16.msra.mxu0 %v1763
    %2129 = vmatmul.bf16.gmra.mxu0 %v1235
    %v2130 = vpop.f32.mrf.mxu0
    %v2131 = vadd.f32 %v1371, %v2130
    %v2132 = vpop.f32.mrf.mxu0
    %2133 = vdwg.mxu0
    %2134 = vmatpush.bf16.msra.mxu0 %v1823
    %2135 = vmatpush.bf16.msra.mxu0 %v1819
    %2136 = vmatpush.bf16.msra.mxu0 %v1815
    %2137 = vmatpush.bf16.msra.mxu0 %v1811
    %2138 = vmatpush.bf16.msra.mxu0 %v1807
    %2139 = vmatpush.bf16.msra.mxu0 %v1803
    %2140 = vmatpush.bf16.msra.mxu0 %v1799
    %2141 = vmatpush.bf16.msra.mxu0 %v1795
    %2142 = vmatmul.bf16.gmra.mxu0 %v1236
    %v2143 = vpop.f32.mrf.mxu0
    %v2144 = vadd.f32 %v2131, %v2143
    %v2145 = vpop.f32.mrf.mxu0
    %2146 = vdwg.mxu0
    %2147 = vmatpush.bf16.msra.mxu0 %v1855
    %2148 = vmatpush.bf16.msra.mxu0 %v1851
    %2149 = vmatpush.bf16.msra.mxu0 %v1847
    %2150 = vmatpush.bf16.msra.mxu0 %v1843
    %2151 = vmatpush.bf16.msra.mxu0 %v1839
    %2152 = vmatpush.bf16.msra.mxu0 %v1835
    %2153 = vmatpush.bf16.msra.mxu0 %v1831
    %2154 = vmatpush.bf16.msra.mxu0 %v1827
    %2155 = vmatmul.bf16.gmra.mxu0 %v1237
    %v2156 = vpop.f32.mrf.mxu0
    %v2157 = vadd.f32 %v2144, %v2156
    %v2158 = vpop.f32.mrf.mxu0
    %2159 = vdwg.mxu0
    %2160 = vmatpush.bf16.msra.mxu0 %v1887
    %2161 = vmatpush.bf16.msra.mxu0 %v1883
    %2162 = vmatpush.bf16.msra.mxu0 %v1879
    %2163 = vmatpush.bf16.msra.mxu0 %v1875
    %2164 = vmatpush.bf16.msra.mxu0 %v1871
    %2165 = vmatpush.bf16.msra.mxu0 %v1867
    %2166 = vmatpush.bf16.msra.mxu0 %v1863
    %2167 = vmatpush.bf16.msra.mxu0 %v1859
    %2168 = vmatmul.bf16.gmra.mxu0 %v1238
    %v2169 = vpop.f32.mrf.mxu0
    %v2170 = vadd.f32 %v2157, %v2169
    %v2171 = vpop.f32.mrf.mxu0
    %2172 = vdwg.mxu0
    %2173 = vmatpush.bf16.msra.mxu0 %v1792
    %2174 = vmatpush.bf16.msra.mxu0 %v1788
    %2175 = vmatpush.bf16.msra.mxu0 %v1784
    %2176 = vmatpush.bf16.msra.mxu0 %v1780
    %2177 = vmatpush.bf16.msra.mxu0 %v1776
    %2178 = vmatpush.bf16.msra.mxu0 %v1772
    %2179 = vmatpush.bf16.msra.mxu0 %v1768
    %2180 = vmatpush.bf16.msra.mxu0 %v1764
    %2181 = vmatmul.bf16.gmra.mxu0 %v1235
    %v2182 = vpop.f32.mrf.mxu0
    %v2183 = vadd.f32 %v1372, %v2182
    %v2184 = vpop.f32.mrf.mxu0
    %2185 = vdwg.mxu0
    %2186 = vmatpush.bf16.msra.mxu0 %v1824
    %2187 = vmatpush.bf16.msra.mxu0 %v1820
    %2188 = vmatpush.bf16.msra.mxu0 %v1816
    %2189 = vmatpush.bf16.msra.mxu0 %v1812
    %2190 = vmatpush.bf16.msra.mxu0 %v1808
    %2191 = vmatpush.bf16.msra.mxu0 %v1804
    %2192 = vmatpush.bf16.msra.mxu0 %v1800
    %2193 = vmatpush.bf16.msra.mxu0 %v1796
    %2194 = vmatmul.bf16.gmra.mxu0 %v1236
    %v2195 = vpop.f32.mrf.mxu0
    %v2196 = vadd.f32 %v2183, %v2195
    %v2197 = vpop.f32.mrf.mxu0
    %2198 = vdwg.mxu0
    %2199 = vmatpush.bf16.msra.mxu0 %v1856
    %2200 = vmatpush.bf16.msra.mxu0 %v1852
    %2201 = vmatpush.bf16.msra.mxu0 %v1848
    %2202 = vmatpush.bf16.msra.mxu0 %v1844
    %2203 = vmatpush.bf16.msra.mxu0 %v1840
    %2204 = vmatpush.bf16.msra.mxu0 %v1836
    %2205 = vmatpush.bf16.msra.mxu0 %v1832
    %2206 = vmatpush.bf16.msra.mxu0 %v1828
    %2207 = vmatmul.bf16.gmra.mxu0 %v1237
    %v2208 = vpop.f32.mrf.mxu0
    %v2209 = vadd.f32 %v2196, %v2208
    %v2210 = vpop.f32.mrf.mxu0
    %2211 = vdwg.mxu0
    %2212 = vmatpush.bf16.msra.mxu0 %v1888
    %2213 = vmatpush.bf16.msra.mxu0 %v1884
    %2214 = vmatpush.bf16.msra.mxu0 %v1880
    %2215 = vmatpush.bf16.msra.mxu0 %v1876
    %2216 = vmatpush.bf16.msra.mxu0 %v1872
    %2217 = vmatpush.bf16.msra.mxu0 %v1868
    %2218 = vmatpush.bf16.msra.mxu0 %v1864
    %2219 = vmatpush.bf16.msra.mxu0 %v1860
    %2220 = vmatmul.bf16.gmra.mxu0 %v1238
    %v2221 = vpop.f32.mrf.mxu0
    %v2222 = vadd.f32 %v2209, %v2221
    %v2223 = vpop.f32.mrf.mxu0
    %2224 = vdwg.mxu0
    %v2225 = vmax.f32 %v2066, 0.0
    %v2226 = vmax.f32 %v2118, 0.0
    %v2227 = vmax.f32 %v2170, 0.0
    %v2228 = vmax.f32 %v2222, 0.0
    %v2229 = vpack.c.bf16 %v2225, %v2225
    %v2230 = vpack.c.bf16 %v2226, %v2226
    %v2231 = vpack.c.bf16 %v2227, %v2227
    %v2232 = vpack.c.bf16 %v2228, %v2228
    %v2233 = vld [vmem:[%s9] sm:$0xf]
    %v2234 = vld [vmem:[%s9 + $0x4] sm:$0xf]
    %v2235 = vld [vmem:[%s9 + $0x8] sm:$0xf]
    %v2236 = vld [vmem:[%s9 + $0xc] sm:$0xf]
    %v2237 = vld [vmem:[%s9 + $0x10] sm:$0xf]
    %v2238 = vld [vmem:[%s9 + $0x14] sm:$0xf]
    %v2239 = vld [vmem:[%s9 + $0x18] sm:$0xf]
    %v2240 = vld [vmem:[%s9 + $0x1c] sm:$0xf]
    %v2241 = vld [vmem:[%s9 + $0x20] sm:$0xf]
    %v2242 = vld [vmem:[%s9 + $0x24] sm:$0xf]
    %v2243 = vld [vmem:[%s9 + $0x28] sm:$0xf]
    %v2244 = vld [vmem:[%s9 + $0x2c] sm:$0xf]
    %v2245 = vld [vmem:[%s9 + $0x30] sm:$0xf]
    %v2246 = vld [vmem:[%s9 + $0x34] sm:$0xf]
    %v2247 = vld [vmem:[%s9 + $0x38] sm:$0xf]
    %v2248 = vld [vmem:[%s9 + $0x3c] sm:$0xf]
    %v2249 = vld [vmem:[%s9 + $0x40] sm:$0xf]
    %v2250 = vld [vmem:[%s9 + $0x44] sm:$0xf]
    %v2251 = vld [vmem:[%s9 + $0x48] sm:$0xf]
    %v2252 = vld [vmem:[%s9 + $0x4c] sm:$0xf]
    %v2253 = vld [vmem:[%s9 + $0x50] sm:$0xf]
    %v2254 = vld [vmem:[%s9 + $0x54] sm:$0xf]
    %v2255 = vld [vmem:[%s9 + $0x58] sm:$0xf]
    %v2256 = vld [vmem:[%s9 + $0x5c] sm:$0xf]
    %v2257 = vld [vmem:[%s9 + $0x60] sm:$0xf]
    %v2258 = vld [vmem:[%s9 + $0x64] sm:$0xf]
    %v2259 = vld [vmem:[%s9 + $0x68] sm:$0xf]
    %v2260 = vld [vmem:[%s9 + $0x6c] sm:$0xf]
    %v2261 = vld [vmem:[%s9 + $0x70] sm:$0xf]
    %v2262 = vld [vmem:[%s9 + $0x74] sm:$0xf]
    %v2263 = vld [vmem:[%s9 + $0x78] sm:$0xf]
    %v2264 = vld [vmem:[%s9 + $0x7c] sm:$0xf]
    %v2265 = vld [vmem:[%s9 + $0x80] sm:$0xf]
    %v2266 = vld [vmem:[%s9 + $0x84] sm:$0xf]
    %v2267 = vld [vmem:[%s9 + $0x88] sm:$0xf]
    %v2268 = vld [vmem:[%s9 + $0x8c] sm:$0xf]
    %v2269 = vld [vmem:[%s9 + $0x90] sm:$0xf]
    %v2270 = vld [vmem:[%s9 + $0x94] sm:$0xf]
    %v2271 = vld [vmem:[%s9 + $0x98] sm:$0xf]
    %v2272 = vld [vmem:[%s9 + $0x9c] sm:$0xf]
    %v2273 = vld [vmem:[%s9 + $0xa0] sm:$0xf]
    %v2274 = vld [vmem:[%s9 + $0xa4] sm:$0xf]
    %v2275 = vld [vmem:[%s9 + $0xa8] sm:$0xf]
    %v2276 = vld [vmem:[%s9 + $0xac] sm:$0xf]
    %v2277 = vld [vmem:[%s9 + $0xb0] sm:$0xf]
    %v2278 = vld [vmem:[%s9 + $0xb4] sm:$0xf]
    %v2279 = vld [vmem:[%s9 + $0xb8] sm:$0xf]
    %v2280 = vld [vmem:[%s9 + $0xbc] sm:$0xf]
    %v2281 = vld [vmem:[%s9 + $0xc0] sm:$0xf]
    %v2282 = vld [vmem:[%s9 + $0xc4] sm:$0xf]
    %v2283 = vld [vmem:[%s9 + $0xc8] sm:$0xf]
    %v2284 = vld [vmem:[%s9 + $0xcc] sm:$0xf]
    %v2285 = vld [vmem:[%s9 + $0xd0] sm:$0xf]
    %v2286 = vld [vmem:[%s9 + $0xd4] sm:$0xf]
    %v2287 = vld [vmem:[%s9 + $0xd8] sm:$0xf]
    %v2288 = vld [vmem:[%s9 + $0xdc] sm:$0xf]
    %v2289 = vld [vmem:[%s9 + $0xe0] sm:$0xf]
    %v2290 = vld [vmem:[%s9 + $0xe4] sm:$0xf]
    %v2291 = vld [vmem:[%s9 + $0xe8] sm:$0xf]
    %v2292 = vld [vmem:[%s9 + $0xec] sm:$0xf]
    %v2293 = vld [vmem:[%s9 + $0xf0] sm:$0xf]
    %v2294 = vld [vmem:[%s9 + $0xf4] sm:$0xf]
    %v2295 = vld [vmem:[%s9 + $0xf8] sm:$0xf]
    %v2296 = vld [vmem:[%s9 + $0xfc] sm:$0xf]
    %v2297 = vld [vmem:[#allocation2] sm:$0x1]
    %v2299 = vperm.slane %v2297, 0
    %v2365 = vunpack.c.l.b16 %v2233
    %v2366 = vunpack.c.l.b16 %v2234
    %v2367 = vunpack.c.l.b16 %v2235
    %v2368 = vunpack.c.l.b16 %v2236
    %v2369 = vunpack.c.l.b16 %v2237
    %v2370 = vunpack.c.l.b16 %v2238
    %v2371 = vunpack.c.l.b16 %v2239
    %v2372 = vunpack.c.l.b16 %v2240
    %v2373 = vunpack.c.l.b16 %v2241
    %v2374 = vunpack.c.l.b16 %v2242
    %v2375 = vunpack.c.l.b16 %v2243
    %v2376 = vunpack.c.l.b16 %v2244
    %v2377 = vunpack.c.l.b16 %v2245
    %v2378 = vunpack.c.l.b16 %v2246
    %v2379 = vunpack.c.l.b16 %v2247
    %v2380 = vunpack.c.l.b16 %v2248
    %v2381 = vunpack.c.l.b16 %v2249
    %v2382 = vunpack.c.l.b16 %v2250
    %v2383 = vunpack.c.l.b16 %v2251
    %v2384 = vunpack.c.l.b16 %v2252
    %v2385 = vunpack.c.l.b16 %v2253
    %v2386 = vunpack.c.l.b16 %v2254
    %v2387 = vunpack.c.l.b16 %v2255
    %v2388 = vunpack.c.l.b16 %v2256
    %v2389 = vunpack.c.l.b16 %v2257
    %v2390 = vunpack.c.l.b16 %v2258
    %v2391 = vunpack.c.l.b16 %v2259
    %v2392 = vunpack.c.l.b16 %v2260
    %v2393 = vunpack.c.l.b16 %v2261
    %v2394 = vunpack.c.l.b16 %v2262
    %v2395 = vunpack.c.l.b16 %v2263
    %v2396 = vunpack.c.l.b16 %v2264
    %v2397 = vunpack.c.l.b16 %v2265
    %v2398 = vunpack.c.l.b16 %v2266
    %v2399 = vunpack.c.l.b16 %v2267
    %v2400 = vunpack.c.l.b16 %v2268
    %v2401 = vunpack.c.l.b16 %v2269
    %v2402 = vunpack.c.l.b16 %v2270
    %v2403 = vunpack.c.l.b16 %v2271
    %v2404 = vunpack.c.l.b16 %v2272
    %v2405 = vunpack.c.l.b16 %v2273
    %v2406 = vunpack.c.l.b16 %v2274
    %v2407 = vunpack.c.l.b16 %v2275
    %v2408 = vunpack.c.l.b16 %v2276
    %v2409 = vunpack.c.l.b16 %v2277
    %v2410 = vunpack.c.l.b16 %v2278
    %v2411 = vunpack.c.l.b16 %v2279
    %v2412 = vunpack.c.l.b16 %v2280
    %v2413 = vunpack.c.l.b16 %v2281
    %v2414 = vunpack.c.l.b16 %v2282
    %v2415 = vunpack.c.l.b16 %v2283
    %v2416 = vunpack.c.l.b16 %v2284
    %v2417 = vunpack.c.l.b16 %v2285
    %v2418 = vunpack.c.l.b16 %v2286
    %v2419 = vunpack.c.l.b16 %v2287
    %v2420 = vunpack.c.l.b16 %v2288
    %v2421 = vunpack.c.l.b16 %v2289
    %v2422 = vunpack.c.l.b16 %v2290
    %v2423 = vunpack.c.l.b16 %v2291
    %v2424 = vunpack.c.l.b16 %v2292
    %v2425 = vunpack.c.l.b16 %v2293
    %v2426 = vunpack.c.l.b16 %v2294
    %v2427 = vunpack.c.l.b16 %v2295
    %v2428 = vunpack.c.l.b16 %v2296
    %v2429 = vpack.c.b16 %v2366, %v2365
    %v2430 = vpack.c.b16 %v2368, %v2367
    %v2431 = vpack.c.b16 %v2370, %v2369
    %v2432 = vpack.c.b16 %v2372, %v2371
    %v2433 = vpack.c.b16 %v2374, %v2373
    %v2434 = vpack.c.b16 %v2376, %v2375
    %v2435 = vpack.c.b16 %v2378, %v2377
    %v2436 = vpack.c.b16 %v2380, %v2379
    %v2437 = vpack.c.b16 %v2382, %v2381
    %v2438 = vpack.c.b16 %v2384, %v2383
    %v2439 = vpack.c.b16 %v2386, %v2385
    %v2440 = vpack.c.b16 %v2388, %v2387
    %v2441 = vpack.c.b16 %v2390, %v2389
    %v2442 = vpack.c.b16 %v2392, %v2391
    %v2443 = vpack.c.b16 %v2394, %v2393
    %v2444 = vpack.c.b16 %v2396, %v2395
    %v2445 = vpack.c.b16 %v2398, %v2397
    %v2446 = vpack.c.b16 %v2400, %v2399
    %v2447 = vpack.c.b16 %v2402, %v2401
    %v2448 = vpack.c.b16 %v2404, %v2403
    %v2449 = vpack.c.b16 %v2406, %v2405
    %v2450 = vpack.c.b16 %v2408, %v2407
    %v2451 = vpack.c.b16 %v2410, %v2409
    %v2452 = vpack.c.b16 %v2412, %v2411
    %v2453 = vpack.c.b16 %v2414, %v2413
    %v2454 = vpack.c.b16 %v2416, %v2415
    %v2455 = vpack.c.b16 %v2418, %v2417
    %v2456 = vpack.c.b16 %v2420, %v2419
    %v2457 = vpack.c.b16 %v2422, %v2421
    %v2458 = vpack.c.b16 %v2424, %v2423
    %v2459 = vpack.c.b16 %v2426, %v2425
    %v2460 = vpack.c.b16 %v2428, %v2427
    %2493 = vmatpush.bf16.msra.mxu0 %v2436
    %2494 = vmatpush.bf16.msra.mxu0 %v2435
    %2495 = vmatpush.bf16.msra.mxu0 %v2434
    %2496 = vmatpush.bf16.msra.mxu0 %v2433
    %2497 = vmatpush.bf16.msra.mxu0 %v2432
    %2498 = vmatpush.bf16.msra.mxu0 %v2431
    %2499 = vmatpush.bf16.msra.mxu0 %v2430
    %2500 = vmatpush.bf16.msra.mxu0 %v2429
    %2501 = vmatmul.bf16.gmra.mxu0 %v2229
    %v2502 = vpop.f32.mrf.mxu0
    %v2503 = vadd.f32 %v2299, %v2502
    %v2504 = vpop.f32.mrf.mxu0
    %2505 = vdwg.mxu0
    %2506 = vmatpush.bf16.msra.mxu0 %v2444
    %2507 = vmatpush.bf16.msra.mxu0 %v2443
    %2508 = vmatpush.bf16.msra.mxu0 %v2442
    %2509 = vmatpush.bf16.msra.mxu0 %v2441
    %2510 = vmatpush.bf16.msra.mxu0 %v2440
    %2511 = vmatpush.bf16.msra.mxu0 %v2439
    %2512 = vmatpush.bf16.msra.mxu0 %v2438
    %2513 = vmatpush.bf16.msra.mxu0 %v2437
    %2514 = vmatmul.bf16.gmra.mxu0 %v2230
    %v2515 = vpop.f32.mrf.mxu0
    %v2516 = vadd.f32 %v2503, %v2515
    %v2517 = vpop.f32.mrf.mxu0
    %2518 = vdwg.mxu0
    %2519 = vmatpush.bf16.msra.mxu0 %v2452
    %2520 = vmatpush.bf16.msra.mxu0 %v2451
    %2521 = vmatpush.bf16.msra.mxu0 %v2450
    %2522 = vmatpush.bf16.msra.mxu0 %v2449
    %2523 = vmatpush.bf16.msra.mxu0 %v2448
    %2524 = vmatpush.bf16.msra.mxu0 %v2447
    %2525 = vmatpush.bf16.msra.mxu0 %v2446
    %2526 = vmatpush.bf16.msra.mxu0 %v2445
    %2527 = vmatmul.bf16.gmra.mxu0 %v2231
    %v2528 = vpop.f32.mrf.mxu0
    %v2529 = vadd.f32 %v2516, %v2528
    %v2530 = vpop.f32.mrf.mxu0
    %2531 = vdwg.mxu0
    %2532 = vmatpush.bf16.msra.mxu0 %v2460
    %2533 = vmatpush.bf16.msra.mxu0 %v2459
    %2534 = vmatpush.bf16.msra.mxu0 %v2458
    %2535 = vmatpush.bf16.msra.mxu0 %v2457
    %2536 = vmatpush.bf16.msra.mxu0 %v2456
    %2537 = vmatpush.bf16.msra.mxu0 %v2455
    %2538 = vmatpush.bf16.msra.mxu0 %v2454
    %2539 = vmatpush.bf16.msra.mxu0 %v2453
    %2540 = vmatmul.bf16.gmra.mxu0 %v2232
    %v2541 = vpop.f32.mrf.mxu0
    %v2542 = vadd.f32 %v2529, %v2541
    %v2543 = vpop.f32.mrf.mxu0
    %2544 = vdwg.mxu0
    %vm2545 = vcmask 7168
    %2546 = vst.msk [vmem:[%s11] sm:$0xff] %vm2545, %v2542
    // Predicated region
    $region54: #{qnet_forward.1} parent=1 // pred_check
      _
    $region55: #{qnet_forward.1} parent=1 // pred_check_branch
      %2548 = sbr.rel (0) target = $region57
    $region56: #{qnet_forward.1} parent=1 // pred_region
      _
    $region57: #{qnet_forward.1} parent=1 // pred_fallthru
      _
    // Predicated region
    $region58: #{qnet_forward.1} parent=1 // pred_check
      _
    $region59: #{qnet_forward.1} parent=1 // pred_check_branch
      %2550 = sbr.rel (0) target = $region61
    $region60: #{qnet_forward.1} parent=1 // pred_region
      _
    $region61: #{qnet_forward.1} parent=1 // pred_fallthru
      _
    %2551 = vsyncpa [#allocation4], 1
    %2552 = vsyncpa [#allocation6], 1

</llo_original>
